<compile_context>
chip_gen: v5e
topology: v5e:2x2
jax: 0.10.0
libtpu: 0.0.40
codegen_flags: <defaults>
</compile_context>

<pallas_src>
import numpy as np
import jax
import jax.numpy as jnp
from jax.experimental import pallas as pl
from jax.experimental.pallas import tpu as pltpu


def out_shape_calc(in_shape, kernel_size, stride=1, padding=0, dilation=1):
    """Same formula as the PyTorch helper (floor division, positive args)."""
    return (in_shape + 2 * padding - dilation * (kernel_size - 1) - 1) // stride + 1


# ---------------------------------------------------------------------------
# Kernel
# ---------------------------------------------------------------------------
def conv_model_kernel(x_ref, w1_ref, b1_ref, w2_ref, b2_ref,
                      w3_ref, b3_ref, w4_ref, b4_ref,
                      s1_ref, s2_ref, s3_ref, g_ref, wl_ref, bl_ref, o_ref):
    f32 = jnp.float32

    def conv_relu(slab, w_ref, b_ref, ksize):
        """slab: (rows, Cin) zero-padded batched slab.  One MXU matmul per tap."""
        n_out = slab.shape[0] - (ksize - 1)
        acc = jnp.dot(slab[0:n_out, :], w_ref[0], preferred_element_type=f32)
        for k in range(1, ksize):
            acc = acc + jnp.dot(slab[k:k + n_out, :], w_ref[k],
                                preferred_element_type=f32)
        return jnp.maximum(acc + b_ref[...], 0.0)

    def scatter(sel_ref, y):
        """Constant 0/1 matrix: re-packs valid rows and inserts zero pad rows."""
        return jnp.dot(sel_ref[...], y, preferred_element_type=f32)

    # ---- conv stack 1 ----
    y = conv_relu(x_ref[...], w1_ref, b1_ref, 3)               # (bt*Lp0-2, H)
    y = conv_relu(scatter(s1_ref, y), w2_ref, b2_ref, 2)        # (bt*Lp2-1, H)
    y = jnp.maximum(y[:-1, :], y[1:, :])                        # MaxPool taps (rows picked by S2)

    # ---- conv stack 2 ----
    y = conv_relu(scatter(s2_ref, y), w3_ref, b3_ref, 3)        # (bt*Lp3-2, H)
    y = conv_relu(scatter(s3_ref, y), w4_ref, b4_ref, 2)        # (bt*Lp4-1, H)
    y = jnp.maximum(y[:-1, :], y[1:, :])                        # MaxPool taps (rows picked by G)

    # ---- classifier (pool row-selection fused into G) ----
    bt, O = o_ref.shape
    acc = jnp.zeros((bt, O), f32)
    for l in range(g_ref.shape[0]):                             # Lf small, unrolled
        h_l = jnp.dot(g_ref[l], y, preferred_element_type=f32)  # (bt, H) pooled slice l
        acc = acc + jnp.dot(h_l, wl_ref[l], preferred_element_type=f32)
    o_ref[...] = (acc + bl_ref[...]).astype(o_ref.dtype)


# ---------------------------------------------------------------------------
# Wrapper helpers
# ---------------------------------------------------------------------------
def _selection_mats(bt, L0):
    """Constant scatter/select matrices for one batch tile of `bt` samples."""
    Lc1 = out_shape_calc(L0, 3, 1, 1)
    Lc2 = out_shape_calc(Lc1, 2, 1, 1)
    Lq1 = out_shape_calc(Lc2, 2, 2, 0)
    Lc3 = out_shape_calc(Lq1, 3, 1, 1)
    Lc4 = out_shape_calc(Lc3, 2, 1, 1)
    Lf = out_shape_calc(Lc4, 2, 2, 0)
    Lp0, Lp2, Lp3, Lp4 = L0 + 2, Lc1 + 2, Lq1 + 2, Lc3 + 2

    S1 = np.zeros((bt * Lp2, bt * Lp0 - 2), np.float32)   # conv1 out -> padded conv2 in
    S2 = np.zeros((bt * Lp3, bt * Lp2 - 2), np.float32)   # pool1 select -> padded conv3 in
    S3 = np.zeros((bt * Lp4, bt * Lp3 - 2), np.float32)   # conv3 out -> padded conv4 in
    G = np.zeros((Lf, bt, bt * Lp4 - 2), np.float32)      # pool2 select per spatial pos
    for b in range(bt):
        for t in range(Lc1):
            S1[b * Lp2 + 1 + t, b * Lp0 + t] = 1.0
        for t in range(Lq1):
            S2[b * Lp3 + 1 + t, b * Lp2 + 2 * t] = 1.0
        for t in range(Lc3):
            S3[b * Lp4 + 1 + t, b * Lp3 + t] = 1.0
        for l in range(Lf):
            G[l, b, b * Lp4 + 2 * l] = 1.0

    dims = dict(Lc1=Lc1, Lc2=Lc2, Lq1=Lq1, Lc3=Lc3, Lc4=Lc4, Lf=Lf,
                Lp0=Lp0, Lp2=Lp2, Lp3=Lp3, Lp4=Lp4)
    return jnp.asarray(S1), jnp.asarray(S2), jnp.asarray(S3), jnp.asarray(G), dims


def conv_model_forward(x_ncl, params, *, batch_tile=8):
    """x_ncl: (B, C_in, L_in) in PyTorch layout. params: PyTorch-layout weights."""
    B, C0, L0 = map(int, x_ncl.shape)
    H = int(params["W1"].shape[0])
    O = int(params["Wl"].shape[0])

    # Batch tiling: one tile if it fits, otherwise tiles that are multiples of 8
    # so every (sublane) block dimension stays 8-aligned.
    if B <= batch_tile:
        bt = B
    else:
        bt = max(8, (batch_tile // 8) * 8)
    B_pad = -(-B // bt) * bt
    n_tiles = B_pad // bt

    S1, S2, S3, G, L = _selection_mats(bt, L0)
    Lf = L["Lf"]
    assert int(params["Wl"].shape[1]) == H * Lf

    # kernel-layout parameters
    def conv_w(w):                                        # (Cout, Cin, K) -> (K, Cin, Cout)
        return jnp.transpose(w, (2, 1, 0))

    w1k, w2k = conv_w(params["W1"]), conv_w(params["W2"])
    w3k, w4k = conv_w(params["W3"]), conv_w(params["W4"])
    b1k, b2k = params["b1"].reshape(1, -1), params["b2"].reshape(1, -1)
    b3k, b4k = params["b3"].reshape(1, -1), params["b4"].reshape(1, -1)
    # Wl[o, c*Lf + l] -> wlk[l, c, o]  (honors nn.Flatten channel-major order)
    wlk = params["Wl"].reshape(O, H, Lf).transpose(2, 1, 0)
    blk = params["bl"].reshape(1, -1)

    # batched, pre-padded, channels-last input slab: (B_pad*(L0+2), C0)
    if B_pad != B:
        x_ncl = jnp.concatenate(
            [x_ncl, jnp.zeros((B_pad - B, C0, L0), x_ncl.dtype)], axis=0)
    x_nlc = jnp.transpose(x_ncl, (0, 2, 1))
    slab0 = jnp.pad(x_nlc, ((0, 0), (1, 1), (0, 0))).reshape(B_pad * L["Lp0"], C0)

    def rep(a):                                           # replicated (constant) input
        nd = a.ndim
        return pl.BlockSpec(a.shape, lambda i: (0,) * nd)

    conv_flops = 2 * B_pad * (L["Lc1"] * 3 * C0 * H + L["Lc2"] * 2 * H * H +
                              L["Lc3"] * 3 * H * H + L["Lc4"] * 2 * H * H +
                              Lf * H * O)
    sel_flops = 2 * H * n_tiles * (int(S1.size) + int(S2.size) + int(S3.size) + int(G.size))
    const_bytes = sum(int(a.size) * a.dtype.itemsize for a in
                      (w1k, b1k, w2k, b2k, w3k, b3k, w4k, b4k, S1, S2, S3, G, wlk, blk))
    bytes_accessed = (int(slab0.size) * slab0.dtype.itemsize + const_bytes +
                      B_pad * O * slab0.dtype.itemsize)

    out = pl.pallas_call(
        conv_model_kernel,
        out_shape=jax.ShapeDtypeStruct((B_pad, O), x_ncl.dtype),
        grid=(n_tiles,),
        in_specs=[
            pl.BlockSpec((bt * L["Lp0"], C0), lambda i: (i, 0)),   # input slab tile
            rep(w1k), rep(b1k), rep(w2k), rep(b2k),                # conv1, conv2
            rep(w3k), rep(b3k), rep(w4k), rep(b4k),                # conv3, conv4
            rep(S1), rep(S2), rep(S3), rep(G),                     # scatter / pool selects
            rep(wlk), rep(blk),                                    # classifier
        ],
        out_specs=pl.BlockSpec((bt, O), lambda i: (i, 0)),
        compiler_params=pltpu.CompilerParams(
            dimension_semantics=("parallel",)),
        cost_estimate=pl.CostEstimate(flops=int(conv_flops + sel_flops),
                                      transcendentals=0,
                                      bytes_accessed=int(bytes_accessed)),
    )(slab0, w1k, b1k, w2k, b2k, w3k, b3k, w4k, b4k, S1, S2, S3, G, wlk, blk)

    return out[:B]


# ---------------------------------------------------------------------------
# Deterministic init (PyTorch layout) + pure-JAX reference
# ---------------------------------------------------------------------------
def init_params(key, in_channels, in_length, hidden, out_shape, dtype=jnp.float32):
    Lc1 = out_shape_calc(in_length, 3, 1, 1)
    Lc2 = out_shape_calc(Lc1, 2, 1, 1)
    Lq1 = out_shape_calc(Lc2, 2, 2, 0)
    Lc3 = out_shape_calc(Lq1, 3, 1, 1)
    Lc4 = out_shape_calc(Lc3, 2, 1, 1)
    Lf = out_shape_calc(Lc4, 2, 2, 0)

    ks = jax.random.split(key, 10)

    def u(k, shape, fan_in):
        bound = 1.0 / (fan_in ** 0.5)
        return jax.random.uniform(k, shape, dtype, -bound, bound)

    return dict(
        W1=u(ks[0], (hidden, in_channels, 3), in_channels * 3),
        b1=u(ks[1], (hidden,), in_channels * 3),
        W2=u(ks[2], (hidden, hidden, 2), hidden * 2),
        b2=u(ks[3], (hidden,), hidden * 2),
        W3=u(ks[4], (hidden, hidden, 3), hidden * 3),
        b3=u(ks[5], (hidden,), hidden * 3),
        W4=u(ks[6], (hidden, hidden, 2), hidden * 2),
        b4=u(ks[7], (hidden,), hidden * 2),
        Wl=u(ks[8], (out_shape, hidden * Lf), hidden * Lf),
        bl=u(ks[9], (out_shape,), hidden * Lf),
    )


def ref_forward(x_ncl, params):
    """Plain-JAX reference with PyTorch Conv1d / MaxPool1d / Flatten semantics."""
    def conv1d(x, w, b, pad):
        y = jax.lax.conv_general_dilated(
            x, w, window_strides=(1,), padding=[(pad, pad)],
            dimension_numbers=("NCH", "OIH", "NCH"))
        return y + b[None, :, None]

    def maxpool2(x):
        return jax.lax.reduce_window(x, -jnp.inf, jax.lax.max,
                                     (1, 1, 2), (1, 1, 2), "VALID")

    h = jax.nn.relu(conv1d(x_ncl, params["W1"], params["b1"], 1))
    h = jax.nn.relu(conv1d(h, params["W2"], params["b2"], 1))
    h = maxpool2(h)
    h = jax.nn.relu(conv1d(h, params["W3"], params["b3"], 1))
    h = jax.nn.relu(conv1d(h, params["W4"], params["b4"], 1))
    h = maxpool2(h)
    flat = h.reshape(h.shape[0], -1)                      # channel-major, like nn.Flatten
    return flat @ params["Wl"].T + params["bl"]


if __name__ == "__main__":
    key = jax.random.PRNGKey(0)
    k_x, k_p = jax.random.split(key)

    batch, in_channels, in_length = 8, 4, 16
    hidden_units, out_units = 32, 16

    x = jax.random.normal(k_x, (batch, in_channels, in_length), jnp.float32)
    params = init_params(k_p, in_channels, in_length, hidden_units, out_units)

    out = conv_model_forward(x, params, batch_tile=8)
    out = jax.block_until_ready(out)

    ref = ref_forward(x, params)
    assert out.shape == (batch, out_units)
    err = float(jnp.max(jnp.abs(out - ref)))
    assert jnp.allclose(out, ref, atol=1e-4, rtol=1e-4), err

    print("KERNEL_OK")
</pallas_src>

<mosaic_0001>
module attributes {stable_mosaic.version = 11 : i64} {
  func.func @conv_model_kernel(%arg0: i32, %arg1: memref<144x4xf32, #tpu.memory_space<vmem>>, %arg2: memref<3x4x32xf32, #tpu.memory_space<vmem>>, %arg3: memref<1x32xf32, #tpu.memory_space<vmem>>, %arg4: memref<2x32x32xf32, #tpu.memory_space<vmem>>, %arg5: memref<1x32xf32, #tpu.memory_space<vmem>>, %arg6: memref<3x32x32xf32, #tpu.memory_space<vmem>>, %arg7: memref<1x32xf32, #tpu.memory_space<vmem>>, %arg8: memref<2x32x32xf32, #tpu.memory_space<vmem>>, %arg9: memref<1x32xf32, #tpu.memory_space<vmem>>, %arg10: memref<144x142xf32, #tpu.memory_space<vmem>>, %arg11: memref<80x142xf32, #tpu.memory_space<vmem>>, %arg12: memref<80x78xf32, #tpu.memory_space<vmem>>, %arg13: memref<4x8x78xf32, #tpu.memory_space<vmem>>, %arg14: memref<4x32x16xf32, #tpu.memory_space<vmem>>, %arg15: memref<1x16xf32, #tpu.memory_space<vmem>>, %arg16: memref<8x16xf32, #tpu.memory_space<vmem>>) attributes {dimension_semantics = [#tpu.dimension_semantics<parallel>], iteration_bounds = array<i64: 1>, scalar_prefetch = 0 : i64, scratch_operands = 0 : i64, tpu.core_type = #tpu.core_type<tc>, window_params = [{transform_indices = @transform_0, window_bounds = array<i64: 144, 4>}, {pipeline_mode = #tpu.pipeline_mode<synchronous>, transform_indices = @transform_1, window_bounds = array<i64: 3, 4, 32>}, {pipeline_mode = #tpu.pipeline_mode<synchronous>, transform_indices = @transform_2, window_bounds = array<i64: 1, 32>}, {pipeline_mode = #tpu.pipeline_mode<synchronous>, transform_indices = @transform_3, window_bounds = array<i64: 2, 32, 32>}, {pipeline_mode = #tpu.pipeline_mode<synchronous>, transform_indices = @transform_4, window_bounds = array<i64: 1, 32>}, {pipeline_mode = #tpu.pipeline_mode<synchronous>, transform_indices = @transform_5, window_bounds = array<i64: 3, 32, 32>}, {pipeline_mode = #tpu.pipeline_mode<synchronous>, transform_indices = @transform_6, window_bounds = array<i64: 1, 32>}, {pipeline_mode = #tpu.pipeline_mode<synchronous>, transform_indices = @transform_7, window_bounds = array<i64: 2, 32, 32>}, {pipeline_mode = #tpu.pipeline_mode<synchronous>, transform_indices = @transform_8, window_bounds = array<i64: 1, 32>}, {pipeline_mode = #tpu.pipeline_mode<synchronous>, transform_indices = @transform_9, window_bounds = array<i64: 144, 142>}, {pipeline_mode = #tpu.pipeline_mode<synchronous>, transform_indices = @transform_10, window_bounds = array<i64: 80, 142>}, {pipeline_mode = #tpu.pipeline_mode<synchronous>, transform_indices = @transform_11, window_bounds = array<i64: 80, 78>}, {pipeline_mode = #tpu.pipeline_mode<synchronous>, transform_indices = @transform_12, window_bounds = array<i64: 4, 8, 78>}, {pipeline_mode = #tpu.pipeline_mode<synchronous>, transform_indices = @transform_13, window_bounds = array<i64: 4, 32, 16>}, {pipeline_mode = #tpu.pipeline_mode<synchronous>, transform_indices = @transform_14, window_bounds = array<i64: 1, 16>}, {transform_indices = @transform_15, window_bounds = array<i64: 8, 16>}]} {
    %c0 = arith.constant 0 : index
    %c0_0 = arith.constant 0 : index
    %0 = vector.load %arg1[%c0, %c0_0] : memref<144x4xf32, #tpu.memory_space<vmem>>, vector<144x4xf32>
    %1 = vector.extract_strided_slice %0 {offsets = [0, 0], sizes = [142, 4], strides = [1, 1]} : vector<144x4xf32> to vector<142x4xf32>
    %c0_1 = arith.constant 0 : index
    %c0_2 = arith.constant 0 : index
    %c0_3 = arith.constant 0 : index
    %2 = vector.load %arg2[%c0_1, %c0_2, %c0_3] : memref<3x4x32xf32, #tpu.memory_space<vmem>>, vector<1x4x32xf32>
    %3 = vector.shape_cast %2 : vector<1x4x32xf32> to vector<4x32xf32>
    %cst = arith.constant dense<0.000000e+00> : vector<142x32xf32>
    %4 = tpu.matmul %1, %3, %cst {dimension_numbers = #tpu.dot_dimension_numbers<[1], [0], [0], [1], [0, 0, 1, 1], [], []>} : vector<142x4xf32>, vector<4x32xf32>, vector<142x32xf32> -> vector<142x32xf32>
    %5 = vector.extract_strided_slice %0 {offsets = [1, 0], sizes = [142, 4], strides = [1, 1]} : vector<144x4xf32> to vector<142x4xf32>
    %c1 = arith.constant 1 : index
    %c0_4 = arith.constant 0 : index
    %c0_5 = arith.constant 0 : index
    %6 = vector.load %arg2[%c1, %c0_4, %c0_5] : memref<3x4x32xf32, #tpu.memory_space<vmem>>, vector<1x4x32xf32>
    %7 = vector.shape_cast %6 : vector<1x4x32xf32> to vector<4x32xf32>
    %cst_6 = arith.constant dense<0.000000e+00> : vector<142x32xf32>
    %8 = tpu.matmul %5, %7, %cst_6 {dimension_numbers = #tpu.dot_dimension_numbers<[1], [0], [0], [1], [0, 0, 1, 1], [], []>} : vector<142x4xf32>, vector<4x32xf32>, vector<142x32xf32> -> vector<142x32xf32>
    %9 = arith.addf %4, %8 : vector<142x32xf32>
    %10 = vector.extract_strided_slice %0 {offsets = [2, 0], sizes = [142, 4], strides = [1, 1]} : vector<144x4xf32> to vector<142x4xf32>
    %c2 = arith.constant 2 : index
    %c0_7 = arith.constant 0 : index
    %c0_8 = arith.constant 0 : index
    %11 = vector.load %arg2[%c2, %c0_7, %c0_8] : memref<3x4x32xf32, #tpu.memory_space<vmem>>, vector<1x4x32xf32>
    %12 = vector.shape_cast %11 : vector<1x4x32xf32> to vector<4x32xf32>
    %cst_9 = arith.constant dense<0.000000e+00> : vector<142x32xf32>
    %13 = tpu.matmul %10, %12, %cst_9 {dimension_numbers = #tpu.dot_dimension_numbers<[1], [0], [0], [1], [0, 0, 1, 1], [], []>} : vector<142x4xf32>, vector<4x32xf32>, vector<142x32xf32> -> vector<142x32xf32>
    %14 = arith.addf %9, %13 : vector<142x32xf32>
    %c0_10 = arith.constant 0 : index
    %c0_11 = arith.constant 0 : index
    %15 = vector.load %arg3[%c0_10, %c0_11] : memref<1x32xf32, #tpu.memory_space<vmem>>, vector<1x32xf32>
    %16 = vector.broadcast %15 : vector<1x32xf32> to vector<142x32xf32>
    %17 = arith.addf %14, %16 : vector<142x32xf32>
    %cst_12 = arith.constant 0.000000e+00 : f32
    %18 = vector.broadcast %cst_12 : f32 to vector<142x32xf32>
    %19 = arith.maximumf %17, %18 : vector<142x32xf32>
    %c0_13 = arith.constant 0 : index
    %c0_14 = arith.constant 0 : index
    %20 = vector.load %arg10[%c0_13, %c0_14] : memref<144x142xf32, #tpu.memory_space<vmem>>, vector<144x142xf32>
    %cst_15 = arith.constant dense<0.000000e+00> : vector<144x32xf32>
    %21 = tpu.matmul %20, %19, %cst_15 {dimension_numbers = #tpu.dot_dimension_numbers<[1], [0], [0], [1], [0, 0, 1, 1], [], []>} : vector<144x142xf32>, vector<142x32xf32>, vector<144x32xf32> -> vector<144x32xf32>
    %22 = vector.extract_strided_slice %21 {offsets = [0, 0], sizes = [143, 32], strides = [1, 1]} : vector<144x32xf32> to vector<143x32xf32>
    %c0_16 = arith.constant 0 : index
    %c0_17 = arith.constant 0 : index
    %c0_18 = arith.constant 0 : index
    %23 = vector.load %arg4[%c0_16, %c0_17, %c0_18] : memref<2x32x32xf32, #tpu.memory_space<vmem>>, vector<1x32x32xf32>
    %24 = vector.shape_cast %23 : vector<1x32x32xf32> to vector<32x32xf32>
    %cst_19 = arith.constant dense<0.000000e+00> : vector<143x32xf32>
    %25 = tpu.matmul %22, %24, %cst_19 {dimension_numbers = #tpu.dot_dimension_numbers<[1], [0], [0], [1], [0, 0, 1, 1], [], []>} : vector<143x32xf32>, vector<32x32xf32>, vector<143x32xf32> -> vector<143x32xf32>
    %26 = vector.extract_strided_slice %21 {offsets = [1, 0], sizes = [143, 32], strides = [1, 1]} : vector<144x32xf32> to vector<143x32xf32>
    %c1_20 = arith.constant 1 : index
    %c0_21 = arith.constant 0 : index
    %c0_22 = arith.constant 0 : index
    %27 = vector.load %arg4[%c1_20, %c0_21, %c0_22] : memref<2x32x32xf32, #tpu.memory_space<vmem>>, vector<1x32x32xf32>
    %28 = vector.shape_cast %27 : vector<1x32x32xf32> to vector<32x32xf32>
    %cst_23 = arith.constant dense<0.000000e+00> : vector<143x32xf32>
    %29 = tpu.matmul %26, %28, %cst_23 {dimension_numbers = #tpu.dot_dimension_numbers<[1], [0], [0], [1], [0, 0, 1, 1], [], []>} : vector<143x32xf32>, vector<32x32xf32>, vector<143x32xf32> -> vector<143x32xf32>
    %30 = arith.addf %25, %29 : vector<143x32xf32>
    %c0_24 = arith.constant 0 : index
    %c0_25 = arith.constant 0 : index
    %31 = vector.load %arg5[%c0_24, %c0_25] : memref<1x32xf32, #tpu.memory_space<vmem>>, vector<1x32xf32>
    %32 = vector.broadcast %31 : vector<1x32xf32> to vector<143x32xf32>
    %33 = arith.addf %30, %32 : vector<143x32xf32>
    %cst_26 = arith.constant 0.000000e+00 : f32
    %34 = vector.broadcast %cst_26 : f32 to vector<143x32xf32>
    %35 = arith.maximumf %33, %34 : vector<143x32xf32>
    %36 = vector.extract_strided_slice %35 {offsets = [0, 0], sizes = [142, 32], strides = [1, 1]} : vector<143x32xf32> to vector<142x32xf32>
    %37 = vector.extract_strided_slice %35 {offsets = [1, 0], sizes = [142, 32], strides = [1, 1]} : vector<143x32xf32> to vector<142x32xf32>
    %38 = arith.maximumf %36, %37 : vector<142x32xf32>
    %c0_27 = arith.constant 0 : index
    %c0_28 = arith.constant 0 : index
    %39 = vector.load %arg11[%c0_27, %c0_28] : memref<80x142xf32, #tpu.memory_space<vmem>>, vector<80x142xf32>
    %cst_29 = arith.constant dense<0.000000e+00> : vector<80x32xf32>
    %40 = tpu.matmul %39, %38, %cst_29 {dimension_numbers = #tpu.dot_dimension_numbers<[1], [0], [0], [1], [0, 0, 1, 1], [], []>} : vector<80x142xf32>, vector<142x32xf32>, vector<80x32xf32> -> vector<80x32xf32>
    %41 = vector.extract_strided_slice %40 {offsets = [0, 0], sizes = [78, 32], strides = [1, 1]} : vector<80x32xf32> to vector<78x32xf32>
    %c0_30 = arith.constant 0 : index
    %c0_31 = arith.constant 0 : index
    %c0_32 = arith.constant 0 : index
    %42 = vector.load %arg6[%c0_30, %c0_31, %c0_32] : memref<3x32x32xf32, #tpu.memory_space<vmem>>, vector<1x32x32xf32>
    %43 = vector.shape_cast %42 : vector<1x32x32xf32> to vector<32x32xf32>
    %cst_33 = arith.constant dense<0.000000e+00> : vector<78x32xf32>
    %44 = tpu.matmul %41, %43, %cst_33 {dimension_numbers = #tpu.dot_dimension_numbers<[1], [0], [0], [1], [0, 0, 1, 1], [], []>} : vector<78x32xf32>, vector<32x32xf32>, vector<78x32xf32> -> vector<78x32xf32>
    %45 = vector.extract_strided_slice %40 {offsets = [1, 0], sizes = [78, 32], strides = [1, 1]} : vector<80x32xf32> to vector<78x32xf32>
    %c1_34 = arith.constant 1 : index
    %c0_35 = arith.constant 0 : index
    %c0_36 = arith.constant 0 : index
    %46 = vector.load %arg6[%c1_34, %c0_35, %c0_36] : memref<3x32x32xf32, #tpu.memory_space<vmem>>, vector<1x32x32xf32>
    %47 = vector.shape_cast %46 : vector<1x32x32xf32> to vector<32x32xf32>
    %cst_37 = arith.constant dense<0.000000e+00> : vector<78x32xf32>
    %48 = tpu.matmul %45, %47, %cst_37 {dimension_numbers = #tpu.dot_dimension_numbers<[1], [0], [0], [1], [0, 0, 1, 1], [], []>} : vector<78x32xf32>, vector<32x32xf32>, vector<78x32xf32> -> vector<78x32xf32>
    %49 = arith.addf %44, %48 : vector<78x32xf32>
    %50 = vector.extract_strided_slice %40 {offsets = [2, 0], sizes = [78, 32], strides = [1, 1]} : vector<80x32xf32> to vector<78x32xf32>
    %c2_38 = arith.constant 2 : index
    %c0_39 = arith.constant 0 : index
    %c0_40 = arith.constant 0 : index
    %51 = vector.load %arg6[%c2_38, %c0_39, %c0_40] : memref<3x32x32xf32, #tpu.memory_space<vmem>>, vector<1x32x32xf32>
    %52 = vector.shape_cast %51 : vector<1x32x32xf32> to vector<32x32xf32>
    %cst_41 = arith.constant dense<0.000000e+00> : vector<78x32xf32>
    %53 = tpu.matmul %50, %52, %cst_41 {dimension_numbers = #tpu.dot_dimension_numbers<[1], [0], [0], [1], [0, 0, 1, 1], [], []>} : vector<78x32xf32>, vector<32x32xf32>, vector<78x32xf32> -> vector<78x32xf32>
    %54 = arith.addf %49, %53 : vector<78x32xf32>
    %c0_42 = arith.constant 0 : index
    %c0_43 = arith.constant 0 : index
    %55 = vector.load %arg7[%c0_42, %c0_43] : memref<1x32xf32, #tpu.memory_space<vmem>>, vector<1x32xf32>
    %56 = vector.broadcast %55 : vector<1x32xf32> to vector<78x32xf32>
    %57 = arith.addf %54, %56 : vector<78x32xf32>
    %cst_44 = arith.constant 0.000000e+00 : f32
    %58 = vector.broadcast %cst_44 : f32 to vector<78x32xf32>
    %59 = arith.maximumf %57, %58 : vector<78x32xf32>
    %c0_45 = arith.constant 0 : index
    %c0_46 = arith.constant 0 : index
    %60 = vector.load %arg12[%c0_45, %c0_46] : memref<80x78xf32, #tpu.memory_space<vmem>>, vector<80x78xf32>
    %cst_47 = arith.constant dense<0.000000e+00> : vector<80x32xf32>
    %61 = tpu.matmul %60, %59, %cst_47 {dimension_numbers = #tpu.dot_dimension_numbers<[1], [0], [0], [1], [0, 0, 1, 1], [], []>} : vector<80x78xf32>, vector<78x32xf32>, vector<80x32xf32> -> vector<80x32xf32>
    %62 = vector.extract_strided_slice %61 {offsets = [0, 0], sizes = [79, 32], strides = [1, 1]} : vector<80x32xf32> to vector<79x32xf32>
    %c0_48 = arith.constant 0 : index
    %c0_49 = arith.constant 0 : index
    %c0_50 = arith.constant 0 : index
    %63 = vector.load %arg8[%c0_48, %c0_49, %c0_50] : memref<2x32x32xf32, #tpu.memory_space<vmem>>, vector<1x32x32xf32>
    %64 = vector.shape_cast %63 : vector<1x32x32xf32> to vector<32x32xf32>
    %cst_51 = arith.constant dense<0.000000e+00> : vector<79x32xf32>
    %65 = tpu.matmul %62, %64, %cst_51 {dimension_numbers = #tpu.dot_dimension_numbers<[1], [0], [0], [1], [0, 0, 1, 1], [], []>} : vector<79x32xf32>, vector<32x32xf32>, vector<79x32xf32> -> vector<79x32xf32>
    %66 = vector.extract_strided_slice %61 {offsets = [1, 0], sizes = [79, 32], strides = [1, 1]} : vector<80x32xf32> to vector<79x32xf32>
    %c1_52 = arith.constant 1 : index
    %c0_53 = arith.constant 0 : index
    %c0_54 = arith.constant 0 : index
    %67 = vector.load %arg8[%c1_52, %c0_53, %c0_54] : memref<2x32x32xf32, #tpu.memory_space<vmem>>, vector<1x32x32xf32>
    %68 = vector.shape_cast %67 : vector<1x32x32xf32> to vector<32x32xf32>
    %cst_55 = arith.constant dense<0.000000e+00> : vector<79x32xf32>
    %69 = tpu.matmul %66, %68, %cst_55 {dimension_numbers = #tpu.dot_dimension_numbers<[1], [0], [0], [1], [0, 0, 1, 1], [], []>} : vector<79x32xf32>, vector<32x32xf32>, vector<79x32xf32> -> vector<79x32xf32>
    %70 = arith.addf %65, %69 : vector<79x32xf32>
    %c0_56 = arith.constant 0 : index
    %c0_57 = arith.constant 0 : index
    %71 = vector.load %arg9[%c0_56, %c0_57] : memref<1x32xf32, #tpu.memory_space<vmem>>, vector<1x32xf32>
    %72 = vector.broadcast %71 : vector<1x32xf32> to vector<79x32xf32>
    %73 = arith.addf %70, %72 : vector<79x32xf32>
    %cst_58 = arith.constant 0.000000e+00 : f32
    %74 = vector.broadcast %cst_58 : f32 to vector<79x32xf32>
    %75 = arith.maximumf %73, %74 : vector<79x32xf32>
    %76 = vector.extract_strided_slice %75 {offsets = [0, 0], sizes = [78, 32], strides = [1, 1]} : vector<79x32xf32> to vector<78x32xf32>
    %77 = vector.extract_strided_slice %75 {offsets = [1, 0], sizes = [78, 32], strides = [1, 1]} : vector<79x32xf32> to vector<78x32xf32>
    %78 = arith.maximumf %76, %77 : vector<78x32xf32>
    %cst_59 = arith.constant 0.000000e+00 : f32
    %79 = vector.broadcast %cst_59 : f32 to vector<8x16xf32>
    %c0_60 = arith.constant 0 : index
    %c0_61 = arith.constant 0 : index
    %c0_62 = arith.constant 0 : index
    %80 = vector.load %arg13[%c0_60, %c0_61, %c0_62] : memref<4x8x78xf32, #tpu.memory_space<vmem>>, vector<1x8x78xf32>
    %81 = vector.shape_cast %80 : vector<1x8x78xf32> to vector<8x78xf32>
    %cst_63 = arith.constant dense<0.000000e+00> : vector<8x32xf32>
    %82 = tpu.matmul %81, %78, %cst_63 {dimension_numbers = #tpu.dot_dimension_numbers<[1], [0], [0], [1], [0, 0, 1, 1], [], []>} : vector<8x78xf32>, vector<78x32xf32>, vector<8x32xf32> -> vector<8x32xf32>
    %c0_64 = arith.constant 0 : index
    %c0_65 = arith.constant 0 : index
    %c0_66 = arith.constant 0 : index
    %83 = vector.load %arg14[%c0_64, %c0_65, %c0_66] : memref<4x32x16xf32, #tpu.memory_space<vmem>>, vector<1x32x16xf32>
    %84 = vector.shape_cast %83 : vector<1x32x16xf32> to vector<32x16xf32>
    %cst_67 = arith.constant dense<0.000000e+00> : vector<8x16xf32>
    %85 = tpu.matmul %82, %84, %cst_67 {dimension_numbers = #tpu.dot_dimension_numbers<[1], [0], [0], [1], [0, 0, 1, 1], [], []>} : vector<8x32xf32>, vector<32x16xf32>, vector<8x16xf32> -> vector<8x16xf32>
    %86 = arith.addf %79, %85 : vector<8x16xf32>
    %c1_68 = arith.constant 1 : index
    %c0_69 = arith.constant 0 : index
    %c0_70 = arith.constant 0 : index
    %87 = vector.load %arg13[%c1_68, %c0_69, %c0_70] : memref<4x8x78xf32, #tpu.memory_space<vmem>>, vector<1x8x78xf32>
    %88 = vector.shape_cast %87 : vector<1x8x78xf32> to vector<8x78xf32>
    %cst_71 = arith.constant dense<0.000000e+00> : vector<8x32xf32>
    %89 = tpu.matmul %88, %78, %cst_71 {dimension_numbers = #tpu.dot_dimension_numbers<[1], [0], [0], [1], [0, 0, 1, 1], [], []>} : vector<8x78xf32>, vector<78x32xf32>, vector<8x32xf32> -> vector<8x32xf32>
    %c1_72 = arith.constant 1 : index
    %c0_73 = arith.constant 0 : index
    %c0_74 = arith.constant 0 : index
    %90 = vector.load %arg14[%c1_72, %c0_73, %c0_74] : memref<4x32x16xf32, #tpu.memory_space<vmem>>, vector<1x32x16xf32>
    %91 = vector.shape_cast %90 : vector<1x32x16xf32> to vector<32x16xf32>
    %cst_75 = arith.constant dense<0.000000e+00> : vector<8x16xf32>
    %92 = tpu.matmul %89, %91, %cst_75 {dimension_numbers = #tpu.dot_dimension_numbers<[1], [0], [0], [1], [0, 0, 1, 1], [], []>} : vector<8x32xf32>, vector<32x16xf32>, vector<8x16xf32> -> vector<8x16xf32>
    %93 = arith.addf %86, %92 : vector<8x16xf32>
    %c2_76 = arith.constant 2 : index
    %c0_77 = arith.constant 0 : index
    %c0_78 = arith.constant 0 : index
    %94 = vector.load %arg13[%c2_76, %c0_77, %c0_78] : memref<4x8x78xf32, #tpu.memory_space<vmem>>, vector<1x8x78xf32>
    %95 = vector.shape_cast %94 : vector<1x8x78xf32> to vector<8x78xf32>
    %cst_79 = arith.constant dense<0.000000e+00> : vector<8x32xf32>
    %96 = tpu.matmul %95, %78, %cst_79 {dimension_numbers = #tpu.dot_dimension_numbers<[1], [0], [0], [1], [0, 0, 1, 1], [], []>} : vector<8x78xf32>, vector<78x32xf32>, vector<8x32xf32> -> vector<8x32xf32>
    %c2_80 = arith.constant 2 : index
    %c0_81 = arith.constant 0 : index
    %c0_82 = arith.constant 0 : index
    %97 = vector.load %arg14[%c2_80, %c0_81, %c0_82] : memref<4x32x16xf32, #tpu.memory_space<vmem>>, vector<1x32x16xf32>
    %98 = vector.shape_cast %97 : vector<1x32x16xf32> to vector<32x16xf32>
    %cst_83 = arith.constant dense<0.000000e+00> : vector<8x16xf32>
    %99 = tpu.matmul %96, %98, %cst_83 {dimension_numbers = #tpu.dot_dimension_numbers<[1], [0], [0], [1], [0, 0, 1, 1], [], []>} : vector<8x32xf32>, vector<32x16xf32>, vector<8x16xf32> -> vector<8x16xf32>
    %100 = arith.addf %93, %99 : vector<8x16xf32>
    %c3 = arith.constant 3 : index
    %c0_84 = arith.constant 0 : index
    %c0_85 = arith.constant 0 : index
    %101 = vector.load %arg13[%c3, %c0_84, %c0_85] : memref<4x8x78xf32, #tpu.memory_space<vmem>>, vector<1x8x78xf32>
    %102 = vector.shape_cast %101 : vector<1x8x78xf32> to vector<8x78xf32>
    %cst_86 = arith.constant dense<0.000000e+00> : vector<8x32xf32>
    %103 = tpu.matmul %102, %78, %cst_86 {dimension_numbers = #tpu.dot_dimension_numbers<[1], [0], [0], [1], [0, 0, 1, 1], [], []>} : vector<8x78xf32>, vector<78x32xf32>, vector<8x32xf32> -> vector<8x32xf32>
    %c3_87 = arith.constant 3 : index
    %c0_88 = arith.constant 0 : index
    %c0_89 = arith.constant 0 : index
    %104 = vector.load %arg14[%c3_87, %c0_88, %c0_89] : memref<4x32x16xf32, #tpu.memory_space<vmem>>, vector<1x32x16xf32>
    %105 = vector.shape_cast %104 : vector<1x32x16xf32> to vector<32x16xf32>
    %cst_90 = arith.constant dense<0.000000e+00> : vector<8x16xf32>
    %106 = tpu.matmul %103, %105, %cst_90 {dimension_numbers = #tpu.dot_dimension_numbers<[1], [0], [0], [1], [0, 0, 1, 1], [], []>} : vector<8x32xf32>, vector<32x16xf32>, vector<8x16xf32> -> vector<8x16xf32>
    %107 = arith.addf %100, %106 : vector<8x16xf32>
    %c0_91 = arith.constant 0 : index
    %c0_92 = arith.constant 0 : index
    %108 = vector.load %arg15[%c0_91, %c0_92] : memref<1x16xf32, #tpu.memory_space<vmem>>, vector<1x16xf32>
    %109 = vector.broadcast %108 : vector<1x16xf32> to vector<8x16xf32>
    %110 = arith.addf %107, %109 : vector<8x16xf32>
    %c0_93 = arith.constant 0 : index
    %c0_94 = arith.constant 0 : index
    %111 = vector.load %arg16[%c0_93, %c0_94] : memref<8x16xf32, #tpu.memory_space<vmem>>, vector<8x16xf32>
    tpu.vector_store %arg16[%c0_93, %c0_94], %110 {strides = array<i32>} : memref<8x16xf32, #tpu.memory_space<vmem>>, vector<8x16xf32>,
    return
  }
  func.func @transform_0(%arg0: i32) -> (i32, i32) {
    %c0_i32 = arith.constant 0 : i32
    %c0_i32_0 = arith.constant 0 : i32
    return %arg0, %c0_i32 : i32, i32
  }
  func.func @transform_1(%arg0: i32) -> (i32, i32, i32) {
    %c0_i32 = arith.constant 0 : i32
    %c0_i32_0 = arith.constant 0 : i32
    %c0_i32_1 = arith.constant 0 : i32
    %c0_i32_2 = arith.constant 0 : i32
    return %c0_i32, %c0_i32_0, %c0_i32_1 : i32, i32, i32
  }
  func.func @transform_2(%arg0: i32) -> (i32, i32) {
    %c0_i32 = arith.constant 0 : i32
    %c0_i32_0 = arith.constant 0 : i32
    %c0_i32_1 = arith.constant 0 : i32
    return %c0_i32, %c0_i32_0 : i32, i32
  }
  func.func @transform_3(%arg0: i32) -> (i32, i32, i32) {
    %c0_i32 = arith.constant 0 : i32
    %c0_i32_0 = arith.constant 0 : i32
    %c0_i32_1 = arith.constant 0 : i32
    %c0_i32_2 = arith.constant 0 : i32
    return %c0_i32, %c0_i32_0, %c0_i32_1 : i32, i32, i32
  }
  func.func @transform_4(%arg0: i32) -> (i32, i32) {
    %c0_i32 = arith.constant 0 : i32
    %c0_i32_0 = arith.constant 0 : i32
    %c0_i32_1 = arith.constant 0 : i32
    return %c0_i32, %c0_i32_0 : i32, i32
  }
  func.func @transform_5(%arg0: i32) -> (i32, i32, i32) {
    %c0_i32 = arith.constant 0 : i32
    %c0_i32_0 = arith.constant 0 : i32
    %c0_i32_1 = arith.constant 0 : i32
    %c0_i32_2 = arith.constant 0 : i32
    return %c0_i32, %c0_i32_0, %c0_i32_1 : i32, i32, i32
  }
  func.func @transform_6(%arg0: i32) -> (i32, i32) {
    %c0_i32 = arith.constant 0 : i32
    %c0_i32_0 = arith.constant 0 : i32
    %c0_i32_1 = arith.constant 0 : i32
    return %c0_i32, %c0_i32_0 : i32, i32
  }
  func.func @transform_7(%arg0: i32) -> (i32, i32, i32) {
    %c0_i32 = arith.constant 0 : i32
    %c0_i32_0 = arith.constant 0 : i32
    %c0_i32_1 = arith.constant 0 : i32
    %c0_i32_2 = arith.constant 0 : i32
    return %c0_i32, %c0_i32_0, %c0_i32_1 : i32, i32, i32
  }
  func.func @transform_8(%arg0: i32) -> (i32, i32) {
    %c0_i32 = arith.constant 0 : i32
    %c0_i32_0 = arith.constant 0 : i32
    %c0_i32_1 = arith.constant 0 : i32
    return %c0_i32, %c0_i32_0 : i32, i32
  }
  func.func @transform_9(%arg0: i32) -> (i32, i32) {
    %c0_i32 = arith.constant 0 : i32
    %c0_i32_0 = arith.constant 0 : i32
    %c0_i32_1 = arith.constant 0 : i32
    return %c0_i32, %c0_i32_0 : i32, i32
  }
  func.func @transform_10(%arg0: i32) -> (i32, i32) {
    %c0_i32 = arith.constant 0 : i32
    %c0_i32_0 = arith.constant 0 : i32
    %c0_i32_1 = arith.constant 0 : i32
    return %c0_i32, %c0_i32_0 : i32, i32
  }
  func.func @transform_11(%arg0: i32) -> (i32, i32) {
    %c0_i32 = arith.constant 0 : i32
    %c0_i32_0 = arith.constant 0 : i32
    %c0_i32_1 = arith.constant 0 : i32
    return %c0_i32, %c0_i32_0 : i32, i32
  }
  func.func @transform_12(%arg0: i32) -> (i32, i32, i32) {
    %c0_i32 = arith.constant 0 : i32
    %c0_i32_0 = arith.constant 0 : i32
    %c0_i32_1 = arith.constant 0 : i32
    %c0_i32_2 = arith.constant 0 : i32
    return %c0_i32, %c0_i32_0, %c0_i32_1 : i32, i32, i32
  }
  func.func @transform_13(%arg0: i32) -> (i32, i32, i32) {
    %c0_i32 = arith.constant 0 : i32
    %c0_i32_0 = arith.constant 0 : i32
    %c0_i32_1 = arith.constant 0 : i32
    %c0_i32_2 = arith.constant 0 : i32
    return %c0_i32, %c0_i32_0, %c0_i32_1 : i32, i32, i32
  }
  func.func @transform_14(%arg0: i32) -> (i32, i32) {
    %c0_i32 = arith.constant 0 : i32
    %c0_i32_0 = arith.constant 0 : i32
    %c0_i32_1 = arith.constant 0 : i32
    return %c0_i32, %c0_i32_0 : i32, i32
  }
  func.func @transform_15(%arg0: i32) -> (i32, i32) {
    %c0_i32 = arith.constant 0 : i32
    %c0_i32_0 = arith.constant 0 : i32
    return %arg0, %c0_i32 : i32, i32
  }
}

</mosaic_0001>

<llo_original>
// kernel: tpu_custom_call.1
$region0: #{tpu_custom_call.1}
  #allocation0 [shape = 'u32[]', space=smem, size = 0x4, offset = 0x4, fixed_abs, tag = 'smem constant byte address 0x4 - core index']
  #allocation1 [shape = 'u32[72,128]{1,0:T(1,128)}', space=vmem, size = 0x9000, scoped, tag = 'internal scratch']
  %s0 = inlined_call_operand.vmem [shape: f32[144,4], index: 0, kind: input, shape index: {}]
  %s1 = inlined_call_operand.hbm [shape: f32[3,4,32], index: 1, kind: input, shape index: {}]
  %s2 = inlined_call_operand.vmem [shape: f32[1,32], index: 2, kind: input, shape index: {}]
  %s3 = inlined_call_operand.hbm [shape: f32[2,32,32], index: 3, kind: input, shape index: {}]
  %s4 = inlined_call_operand.vmem [shape: f32[1,32], index: 4, kind: input, shape index: {}]
  %s5 = inlined_call_operand.vmem [shape: f32[3,32,32], index: 5, kind: input, shape index: {}]
  %s6 = inlined_call_operand.vmem [shape: f32[1,32], index: 6, kind: input, shape index: {}]
  %s7 = inlined_call_operand.hbm [shape: f32[2,32,32], index: 7, kind: input, shape index: {}]
  %s8 = inlined_call_operand.vmem [shape: f32[1,32], index: 8, kind: input, shape index: {}]
  %s9 = inlined_call_operand.vmem [shape: f32[144,142], index: 9, kind: input, shape index: {}]
  %s10 = inlined_call_operand.vmem [shape: f32[80,142], index: 10, kind: input, shape index: {}]
  %s11 = inlined_call_operand.vmem [shape: f32[80,78], index: 11, kind: input, shape index: {}]
  %s12 = inlined_call_operand.vmem [shape: f32[4,8,78], index: 12, kind: input, shape index: {}]
  %s13 = inlined_call_operand.vmem [shape: f32[4,32,16], index: 13, kind: input, shape index: {}]
  %s14 = inlined_call_operand.vmem [shape: f32[1,16], index: 14, kind: input, shape index: {}]
  %s15 = inlined_call_operand.hbm [shape: f32[8,16], index: 15, kind: output, shape index: {}]
  %s16 = sld [smem:[#allocation0]]
  $region82: #{tpu_custom_call.1} parent=0
    _
  %s18 = ssub.s32 1, %s16
  %s19 = scalar_select 0, %s18, %s16
  $region1: #{tpu_custom_call.1} parent=0
    #allocation2 [shape = 'u8[6144]{0}', space=vmem, size = 0x1800, scoped, tag = 'input window, operand 1, single buffered']
    #allocation3 [shape = 's32[1]{0}', space=sflag, size = 0x4, scoped, tag = 'scoped memory for tpu_custom_call.1']
    #allocation4 [shape = 's32[1]{0}', space=sflag, size = 0x4, scoped, tag = 'scoped memory for tpu_custom_call.1']
    #allocation5 [shape = 'u8[32768]{0}', space=vmem, size = 0x8000, scoped, tag = 'input window, operand 3, single buffered']
    #allocation6 [shape = 's32[1]{0}', space=sflag, size = 0x4, scoped, tag = 'scoped memory for tpu_custom_call.1']
    #allocation7 [shape = 'u8[32768]{0}', space=vmem, size = 0x8000, scoped, tag = 'input window, operand 7, single buffered']
    #allocation8 [shape = 'u8[4096]{0}', space=vmem, size = 0x1000, scoped, tag = 'output window, operand 0, single buffered']
    %20 = vsyncpa [#allocation3], 0
    %21 = vsyncpa [#allocation6], 0
    %22 = vsyncpa [#allocation4], 0
    // Predicated region
    $region2: #{tpu_custom_call.1} parent=1 // pred_check
      _
    $region3: #{tpu_custom_call.1} parent=1 // pred_check_branch
      %24 = sbr.rel (0) target = $region5
    $region4: #{tpu_custom_call.1} parent=1 // pred_region
      _
    $region5: #{tpu_custom_call.1} parent=1 // pred_fallthru
      _
    // Predicated region
    $region6: #{tpu_custom_call.1} parent=1 // pred_check
      _
    $region7: #{tpu_custom_call.1} parent=1 // pred_check_branch
      %26 = sbr.rel (0) target = $region9
    $region8: #{tpu_custom_call.1} parent=1 // pred_region
      %28 = vsyncadd [#allocation3], 0
      %s29 = sshll.u32 %s1, 4
      %s30 = int_to_ptr.hbm [resolvable:$true] %s29
      %s31 = sshll.u32 [#allocation2], 4
      %s32 = int_to_ptr.vmem [resolvable:$true] %s31
      %37 = dma.hbm_to_vmem [thread:$0]  %s30, 192, %s32, [#allocation3], 64, 64, 4
    $region9: #{tpu_custom_call.1} parent=1 // pred_fallthru
      _
    // Predicated region
    $region10: #{tpu_custom_call.1} parent=1 // pred_check
      _
    $region11: #{tpu_custom_call.1} parent=1 // pred_check_branch
      %39 = sbr.rel (0) target = $region13
    $region12: #{tpu_custom_call.1} parent=1 // pred_region
      _
    $region13: #{tpu_custom_call.1} parent=1 // pred_fallthru
      _
    // Predicated region
    $region14: #{tpu_custom_call.1} parent=1 // pred_check
      _
    $region15: #{tpu_custom_call.1} parent=1 // pred_check_branch
      %41 = sbr.rel (0) target = $region17
    $region16: #{tpu_custom_call.1} parent=1 // pred_region
      %43 = vsyncadd [#allocation6], 0
      %s44 = sshll.u32 %s3, 4
      %s45 = int_to_ptr.hbm [resolvable:$true] %s44
      %s46 = sshll.u32 [#allocation5], 4
      %s47 = int_to_ptr.vmem [resolvable:$true] %s46
      %52 = dma.hbm_to_vmem [thread:$0]  %s45, 1024, %s47, [#allocation6], 128, 128, 8
    $region17: #{tpu_custom_call.1} parent=1 // pred_fallthru
      _
    // Predicated region
    $region18: #{tpu_custom_call.1} parent=1 // pred_check
      _
    $region19: #{tpu_custom_call.1} parent=1 // pred_check_branch
      %54 = sbr.rel (0) target = $region21
    $region20: #{tpu_custom_call.1} parent=1 // pred_region
      _
    $region21: #{tpu_custom_call.1} parent=1 // pred_fallthru
      _
    // Predicated region
    $region22: #{tpu_custom_call.1} parent=1 // pred_check
      _
    $region23: #{tpu_custom_call.1} parent=1 // pred_check_branch
      %56 = sbr.rel (0) target = $region25
    $region24: #{tpu_custom_call.1} parent=1 // pred_region
      _
    $region25: #{tpu_custom_call.1} parent=1 // pred_fallthru
      _
    // Predicated region
    $region26: #{tpu_custom_call.1} parent=1 // pred_check
      _
    $region27: #{tpu_custom_call.1} parent=1 // pred_check_branch
      %58 = sbr.rel (0) target = $region29
    $region28: #{tpu_custom_call.1} parent=1 // pred_region
      _
    $region29: #{tpu_custom_call.1} parent=1 // pred_fallthru
      _
    // Predicated region
    $region30: #{tpu_custom_call.1} parent=1 // pred_check
      _
    $region31: #{tpu_custom_call.1} parent=1 // pred_check_branch
      %60 = sbr.rel (0) target = $region33
    $region32: #{tpu_custom_call.1} parent=1 // pred_region
      %62 = vsyncadd [#allocation6], 0
      %s63 = sshll.u32 %s7, 4
      %s64 = int_to_ptr.hbm [resolvable:$true] %s63
      %s65 = sshll.u32 [#allocation7], 4
      %s66 = int_to_ptr.vmem [resolvable:$true] %s65
      %71 = dma.hbm_to_vmem [thread:$0]  %s64, 1024, %s66, [#allocation6], 128, 128, 8
    $region33: #{tpu_custom_call.1} parent=1 // pred_fallthru
      _
    // Predicated region
    $region34: #{tpu_custom_call.1} parent=1 // pred_check
      _
    $region35: #{tpu_custom_call.1} parent=1 // pred_check_branch
      %73 = sbr.rel (0) target = $region37
    $region36: #{tpu_custom_call.1} parent=1 // pred_region
      _
    $region37: #{tpu_custom_call.1} parent=1 // pred_fallthru
      _
    // Predicated region
    $region38: #{tpu_custom_call.1} parent=1 // pred_check
      _
    $region39: #{tpu_custom_call.1} parent=1 // pred_check_branch
      %75 = sbr.rel (0) target = $region41
    $region40: #{tpu_custom_call.1} parent=1 // pred_region
      _
    $region41: #{tpu_custom_call.1} parent=1 // pred_fallthru
      _
    // Predicated region
    $region42: #{tpu_custom_call.1} parent=1 // pred_check
      _
    $region43: #{tpu_custom_call.1} parent=1 // pred_check_branch
      %77 = sbr.rel (0) target = $region45
    $region44: #{tpu_custom_call.1} parent=1 // pred_region
      _
    $region45: #{tpu_custom_call.1} parent=1 // pred_fallthru
      _
    // Predicated region
    $region46: #{tpu_custom_call.1} parent=1 // pred_check
      _
    $region47: #{tpu_custom_call.1} parent=1 // pred_check_branch
      %79 = sbr.rel (0) target = $region49
    $region48: #{tpu_custom_call.1} parent=1 // pred_region
      _
    $region49: #{tpu_custom_call.1} parent=1 // pred_fallthru
      _
    // Predicated region
    $region50: #{tpu_custom_call.1} parent=1 // pred_check
      _
    $region51: #{tpu_custom_call.1} parent=1 // pred_check_branch
      %81 = sbr.rel (0) target = $region53
    $region52: #{tpu_custom_call.1} parent=1 // pred_region
      _
    $region53: #{tpu_custom_call.1} parent=1 // pred_fallthru
      _
    // Predicated region
    $region54: #{tpu_custom_call.1} parent=1 // pred_check
      _
    $region55: #{tpu_custom_call.1} parent=1 // pred_check_branch
      %83 = sbr.rel (0) target = $region57
    $region56: #{tpu_custom_call.1} parent=1 // pred_region
      _
    $region57: #{tpu_custom_call.1} parent=1 // pred_fallthru
      _
    // Predicated region
    $region58: #{tpu_custom_call.1} parent=1 // pred_check
      _
    $region59: #{tpu_custom_call.1} parent=1 // pred_check_branch
      %85 = sbr.rel (0) target = $region61
    $region60: #{tpu_custom_call.1} parent=1 // pred_region
      _
    $region61: #{tpu_custom_call.1} parent=1 // pred_fallthru
      _
    // Predicated region
    $region62: #{tpu_custom_call.1} parent=1 // pred_check
      _
    $region63: #{tpu_custom_call.1} parent=1 // pred_check_branch
      %87 = sbr.rel (0) target = $region65
    $region64: #{tpu_custom_call.1} parent=1 // pred_region
      %89 = dma.done [#allocation3], 192
    $region65: #{tpu_custom_call.1} parent=1 // pred_fallthru
      _
    // Predicated region
    $region66: #{tpu_custom_call.1} parent=1 // pred_check
      _
    $region67: #{tpu_custom_call.1} parent=1 // pred_check_branch
      %91 = sbr.rel (0) target = $region69
    $region68: #{tpu_custom_call.1} parent=1 // pred_region
      %93 = dma.done [#allocation6], 1024
    $region69: #{tpu_custom_call.1} parent=1 // pred_fallthru
      _
    // Predicated region
    $region70: #{tpu_custom_call.1} parent=1 // pred_check
      _
    $region71: #{tpu_custom_call.1} parent=1 // pred_check_branch
      %95 = sbr.rel (0) target = $region73
    $region72: #{tpu_custom_call.1} parent=1 // pred_region
      %97 = dma.done [#allocation6], 1024
    $region73: #{tpu_custom_call.1} parent=1 // pred_fallthru
      _
    %v98 = vld [vmem:[%s0] sm:$0xff]
    %v99 = vld [vmem:[%s0 + $0x8] sm:$0xff]
    %v100 = vld [vmem:[%s0 + $0x10] sm:$0xff]
    %v101 = vld [vmem:[%s0 + $0x18] sm:$0xff]
    %v102 = vld [vmem:[%s0 + $0x20] sm:$0xff]
    %v103 = vld [vmem:[%s0 + $0x28] sm:$0xff]
    %v104 = vld [vmem:[%s0 + $0x30] sm:$0xff]
    %v105 = vld [vmem:[%s0 + $0x38] sm:$0xff]
    %v106 = vld [vmem:[%s0 + $0x40] sm:$0xff]
    %v107 = vld [vmem:[%s0 + $0x48] sm:$0xff]
    %v108 = vld [vmem:[%s0 + $0x50] sm:$0xff]
    %v109 = vld [vmem:[%s0 + $0x58] sm:$0xff]
    %v110 = vld [vmem:[%s0 + $0x60] sm:$0xff]
    %v111 = vld [vmem:[%s0 + $0x68] sm:$0xff]
    %v112 = vld [vmem:[%s0 + $0x70] sm:$0xff]
    %v113 = vld [vmem:[%s0 + $0x78] sm:$0xff]
    %v114 = vld [vmem:[%s0 + $0x80] sm:$0xff]
    %v115 = vld [vmem:[%s0 + $0x88] sm:$0xff]
    %v116 = vld [vmem:[#allocation2] sm:$0xf]
    %s117 = scalar_lea.vmem [#allocation2], 4
    %v118 = vld [vmem:[%s117] sm:$0xf]
    %vm137 = vcmask 1046528
    %v138 = vrot.slane %v98, 1
    %v139 = vrot.slane %v99, 1
    %v140 = vsel %vm137, %v138, %v139
    %v141 = vrot.slane %v100, 1
    %v142 = vsel %vm137, %v139, %v141
    %v143 = vrot.slane %v101, 1
    %v144 = vsel %vm137, %v141, %v143
    %v145 = vrot.slane %v102, 1
    %v146 = vsel %vm137, %v143, %v145
    %v147 = vrot.slane %v103, 1
    %v148 = vsel %vm137, %v145, %v147
    %v149 = vrot.slane %v104, 1
    %v150 = vsel %vm137, %v147, %v149
    %v151 = vrot.slane %v105, 1
    %v152 = vsel %vm137, %v149, %v151
    %v153 = vrot.slane %v106, 1
    %v154 = vsel %vm137, %v151, %v153
    %v155 = vrot.slane %v107, 1
    %v156 = vsel %vm137, %v153, %v155
    %v157 = vrot.slane %v108, 1
    %v158 = vsel %vm137, %v155, %v157
    %v159 = vrot.slane %v109, 1
    %v160 = vsel %vm137, %v157, %v159
    %v161 = vrot.slane %v110, 1
    %v162 = vsel %vm137, %v159, %v161
    %v163 = vrot.slane %v111, 1
    %v164 = vsel %vm137, %v161, %v163
    %v165 = vrot.slane %v112, 1
    %v166 = vsel %vm137, %v163, %v165
    %v167 = vrot.slane %v113, 1
    %v168 = vsel %vm137, %v165, %v167
    %v169 = vrot.slane %v114, 1
    %v170 = vsel %vm137, %v167, %v169
    %v171 = vrot.slane %v115, 1
    %v172 = vsel %vm137, %v169, %v171
    %vm173 = vcmask 31744
    %v174 = vsel %vm173, %v140, 0
    %v176 = vsel %vm173, %v142, 0
    %v178 = vsel %vm173, %v144, 0
    %v180 = vsel %vm173, %v146, 0
    %v182 = vsel %vm173, %v148, 0
    %v184 = vsel %vm173, %v150, 0
    %v186 = vsel %vm173, %v152, 0
    %v188 = vsel %vm173, %v154, 0
    %v190 = vsel %vm173, %v156, 0
    %v192 = vsel %vm173, %v158, 0
    %v194 = vsel %vm173, %v160, 0
    %v196 = vsel %vm173, %v162, 0
    %v198 = vsel %vm173, %v164, 0
    %v200 = vsel %vm173, %v166, 0
    %v202 = vsel %vm173, %v168, 0
    %v204 = vsel %vm173, %v170, 0
    %v206 = vsel %vm173, %v172, 0
    %v208 = vsel %vm173, %v171, 0
    %vm210 = vcmask 1043456
    %v212 = vsel %vm210, %v118, 0
    %214 = vmatpush.msra.mxu0 0.0
    %215 = vmatpush.msra.mxu0 0.0
    %216 = vmatpush.msra.mxu0 0.0
    %217 = vmatpush.msra.mxu0 0.0
    %218 = vmatpush.msra.mxu0 0.0
    %219 = vmatpush.msra.mxu0 0.0
    %220 = vmatpush.msra.mxu0 0.0
    %221 = vmatpush.msra.mxu0 0.0
    %222 = vmatpush.msra.mxu0 0.0
    %223 = vmatpush.msra.mxu0 0.0
    %224 = vmatpush.msra.mxu0 0.0
    %225 = vmatpush.msra.mxu0 0.0
    %226 = vmatpush.msra.mxu0 0.0
    %227 = vmatpush.msra.mxu0 0.0
    %228 = vmatpush.msra.mxu0 0.0
    %229 = vmatpush.msra.mxu0 %v212
    %230 = vmatmul.f32.gmra.mxu0 %v174
    %v231 = vpop.f32.mrf.mxu0
    %v232 = vadd.f32 0.0, %v231
    %233 = vmatmul.f32.gmra.mxu0 %v176
    %v234 = vpop.f32.mrf.mxu0
    %v235 = vadd.f32 0.0, %v234
    %236 = vmatmul.f32.gmra.mxu0 %v178
    %v237 = vpop.f32.mrf.mxu0
    %v238 = vadd.f32 0.0, %v237
    %239 = vmatmul.f32.gmra.mxu0 %v180
    %v240 = vpop.f32.mrf.mxu0
    %v241 = vadd.f32 0.0, %v240
    %242 = vmatmul.f32.gmra.mxu0 %v182
    %v243 = vpop.f32.mrf.mxu0
    %v244 = vadd.f32 0.0, %v243
    %245 = vmatmul.f32.gmra.mxu0 %v184
    %v246 = vpop.f32.mrf.mxu0
    %v247 = vadd.f32 0.0, %v246
    %248 = vmatmul.f32.gmra.mxu0 %v186
    %v249 = vpop.f32.mrf.mxu0
    %v250 = vadd.f32 0.0, %v249
    %251 = vmatmul.f32.gmra.mxu0 %v188
    %v252 = vpop.f32.mrf.mxu0
    %v253 = vadd.f32 0.0, %v252
    %254 = vmatmul.f32.gmra.mxu0 %v190
    %v255 = vpop.f32.mrf.mxu0
    %v256 = vadd.f32 0.0, %v255
    %257 = vmatmul.f32.gmra.mxu0 %v192
    %v258 = vpop.f32.mrf.mxu0
    %v259 = vadd.f32 0.0, %v258
    %260 = vmatmul.f32.gmra.mxu0 %v194
    %v261 = vpop.f32.mrf.mxu0
    %v262 = vadd.f32 0.0, %v261
    %263 = vmatmul.f32.gmra.mxu0 %v196
    %v264 = vpop.f32.mrf.mxu0
    %v265 = vadd.f32 0.0, %v264
    %266 = vmatmul.f32.gmra.mxu0 %v198
    %v267 = vpop.f32.mrf.mxu0
    %v268 = vadd.f32 0.0, %v267
    %269 = vmatmul.f32.gmra.mxu0 %v200
    %v270 = vpop.f32.mrf.mxu0
    %v271 = vadd.f32 0.0, %v270
    %272 = vmatmul.f32.gmra.mxu0 %v202
    %v273 = vpop.f32.mrf.mxu0
    %v274 = vadd.f32 0.0, %v273
    %275 = vmatmul.f32.gmra.mxu0 %v204
    %v276 = vpop.f32.mrf.mxu0
    %v277 = vadd.f32 0.0, %v276
    %278 = vmatmul.f32.gmra.mxu0 %v206
    %v279 = vpop.f32.mrf.mxu0
    %v280 = vadd.f32 0.0, %v279
    %281 = vmatmul.f32.gmra.mxu0 %v208
    %v282 = vpop.f32.mrf.mxu0
    %v283 = vadd.f32 0.0, %v282
    %284 = vdwg.mxu0
    %v285 = vsel %vm173, %v98, 0
    %v287 = vsel %vm173, %v99, 0
    %v289 = vsel %vm173, %v100, 0
    %v291 = vsel %vm173, %v101, 0
    %v293 = vsel %vm173, %v102, 0
    %v295 = vsel %vm173, %v103, 0
    %v297 = vsel %vm173, %v104, 0
    %v299 = vsel %vm173, %v105, 0
    %v301 = vsel %vm173, %v106, 0
    %v303 = vsel %vm173, %v107, 0
    %v305 = vsel %vm173, %v108, 0
    %v307 = vsel %vm173, %v109, 0
    %v309 = vsel %vm173, %v110, 0
    %v311 = vsel %vm173, %v111, 0
    %v313 = vsel %vm173, %v112, 0
    %v315 = vsel %vm173, %v113, 0
    %v317 = vsel %vm173, %v114, 0
    %v319 = vsel %vm173, %v115, 0
    %v322 = vsel %vm210, %v116, 0
    %324 = vmatpush.msra.mxu0 0.0
    %325 = vmatpush.msra.mxu0 0.0
    %326 = vmatpush.msra.mxu0 0.0
    %327 = vmatpush.msra.mxu0 0.0
    %328 = vmatpush.msra.mxu0 0.0
    %329 = vmatpush.msra.mxu0 0.0
    %330 = vmatpush.msra.mxu0 0.0
    %331 = vmatpush.msra.mxu0 0.0
    %332 = vmatpush.msra.mxu0 0.0
    %333 = vmatpush.msra.mxu0 0.0
    %334 = vmatpush.msra.mxu0 0.0
    %335 = vmatpush.msra.mxu0 0.0
    %336 = vmatpush.msra.mxu0 0.0
    %337 = vmatpush.msra.mxu0 0.0
    %338 = vmatpush.msra.mxu0 0.0
    %339 = vmatpush.msra.mxu0 %v322
    %340 = vmatmul.f32.gmra.mxu0 %v285
    %v341 = vpop.f32.mrf.mxu0
    %v342 = vadd.f32 %v232, %v341
    %343 = vmatmul.f32.gmra.mxu0 %v287
    %v344 = vpop.f32.mrf.mxu0
    %v345 = vadd.f32 %v235, %v344
    %346 = vmatmul.f32.gmra.mxu0 %v289
    %v347 = vpop.f32.mrf.mxu0
    %v348 = vadd.f32 %v238, %v347
    %349 = vmatmul.f32.gmra.mxu0 %v291
    %v350 = vpop.f32.mrf.mxu0
    %v351 = vadd.f32 %v241, %v350
    %352 = vmatmul.f32.gmra.mxu0 %v293
    %v353 = vpop.f32.mrf.mxu0
    %v354 = vadd.f32 %v244, %v353
    %355 = vmatmul.f32.gmra.mxu0 %v295
    %v356 = vpop.f32.mrf.mxu0
    %v357 = vadd.f32 %v247, %v356
    %358 = vmatmul.f32.gmra.mxu0 %v297
    %v359 = vpop.f32.mrf.mxu0
    %v360 = vadd.f32 %v250, %v359
    %361 = vmatmul.f32.gmra.mxu0 %v299
    %v362 = vpop.f32.mrf.mxu0
    %v363 = vadd.f32 %v253, %v362
    %364 = vmatmul.f32.gmra.mxu0 %v301
    %v365 = vpop.f32.mrf.mxu0
    %v366 = vadd.f32 %v256, %v365
    %367 = vmatmul.f32.gmra.mxu0 %v303
    %v368 = vpop.f32.mrf.mxu0
    %v369 = vadd.f32 %v259, %v368
    %370 = vmatmul.f32.gmra.mxu0 %v305
    %v371 = vpop.f32.mrf.mxu0
    %v372 = vadd.f32 %v262, %v371
    %373 = vmatmul.f32.gmra.mxu0 %v307
    %v374 = vpop.f32.mrf.mxu0
    %v375 = vadd.f32 %v265, %v374
    %376 = vmatmul.f32.gmra.mxu0 %v309
    %v377 = vpop.f32.mrf.mxu0
    %v378 = vadd.f32 %v268, %v377
    %379 = vmatmul.f32.gmra.mxu0 %v311
    %v380 = vpop.f32.mrf.mxu0
    %v381 = vadd.f32 %v271, %v380
    %382 = vmatmul.f32.gmra.mxu0 %v313
    %v383 = vpop.f32.mrf.mxu0
    %v384 = vadd.f32 %v274, %v383
    %385 = vmatmul.f32.gmra.mxu0 %v315
    %v386 = vpop.f32.mrf.mxu0
    %v387 = vadd.f32 %v277, %v386
    %388 = vmatmul.f32.gmra.mxu0 %v317
    %v389 = vpop.f32.mrf.mxu0
    %v390 = vadd.f32 %v280, %v389
    %391 = vmatmul.f32.gmra.mxu0 %v319
    %v392 = vpop.f32.mrf.mxu0
    %v393 = vadd.f32 %v283, %v392
    %394 = vdwg.mxu0
    %s395 = scalar_lea.vmem [#allocation2], 8
    %v396 = vld [vmem:[%s395] sm:$0xf]
    %vm397 = vcmask 1045504
    %v398 = vrot.slane %v98, 2
    %v399 = vrot.slane %v99, 2
    %v400 = vsel %vm397, %v398, %v399
    %v401 = vrot.slane %v100, 2
    %v402 = vsel %vm397, %v399, %v401
    %v403 = vrot.slane %v101, 2
    %v404 = vsel %vm397, %v401, %v403
    %v405 = vrot.slane %v102, 2
    %v406 = vsel %vm397, %v403, %v405
    %v407 = vrot.slane %v103, 2
    %v408 = vsel %vm397, %v405, %v407
    %v409 = vrot.slane %v104, 2
    %v410 = vsel %vm397, %v407, %v409
    %v411 = vrot.slane %v105, 2
    %v412 = vsel %vm397, %v409, %v411
    %v413 = vrot.slane %v106, 2
    %v414 = vsel %vm397, %v411, %v413
    %v415 = vrot.slane %v107, 2
    %v416 = vsel %vm397, %v413, %v415
    %v417 = vrot.slane %v108, 2
    %v418 = vsel %vm397, %v415, %v417
    %v419 = vrot.slane %v109, 2
    %v420 = vsel %vm397, %v417, %v419
    %v421 = vrot.slane %v110, 2
    %v422 = vsel %vm397, %v419, %v421
    %v423 = vrot.slane %v111, 2
    %v424 = vsel %vm397, %v421, %v423
    %v425 = vrot.slane %v112, 2
    %v426 = vsel %vm397, %v423, %v425
    %v427 = vrot.slane %v113, 2
    %v428 = vsel %vm397, %v425, %v427
    %v429 = vrot.slane %v114, 2
    %v430 = vsel %vm397, %v427, %v429
    %v431 = vrot.slane %v115, 2
    %v432 = vsel %vm397, %v429, %v431
    %v433 = vsel %vm173, %v400, 0
    %v435 = vsel %vm173, %v402, 0
    %v437 = vsel %vm173, %v404, 0
    %v439 = vsel %vm173, %v406, 0
    %v441 = vsel %vm173, %v408, 0
    %v443 = vsel %vm173, %v410, 0
    %v445 = vsel %vm173, %v412, 0
    %v447 = vsel %vm173, %v414, 0
    %v449 = vsel %vm173, %v416, 0
    %v451 = vsel %vm173, %v418, 0
    %v453 = vsel %vm173, %v420, 0
    %v455 = vsel %vm173, %v422, 0
    %v457 = vsel %vm173, %v424, 0
    %v459 = vsel %vm173, %v426, 0
    %v461 = vsel %vm173, %v428, 0
    %v463 = vsel %vm173, %v430, 0
    %v465 = vsel %vm173, %v432, 0
    %v467 = vsel %vm173, %v431, 0
    %v470 = vsel %vm210, %v396, 0
    %472 = vmatpush.msra.mxu0 0.0
    %473 = vmatpush.msra.mxu0 0.0
    %474 = vmatpush.msra.mxu0 0.0
    %475 = vmatpush.msra.mxu0 0.0
    %476 = vmatpush.msra.mxu0 0.0
    %477 = vmatpush.msra.mxu0 0.0
    %478 = vmatpush.msra.mxu0 0.0
    %479 = vmatpush.msra.mxu0 0.0
    %480 = vmatpush.msra.mxu0 0.0
    %481 = vmatpush.msra.mxu0 0.0
    %482 = vmatpush.msra.mxu0 0.0
    %483 = vmatpush.msra.mxu0 0.0
    %484 = vmatpush.msra.mxu0 0.0
    %485 = vmatpush.msra.mxu0 0.0
    %486 = vmatpush.msra.mxu0 0.0
    %487 = vmatpush.msra.mxu0 %v470
    %488 = vmatmul.f32.gmra.mxu0 %v433
    %v489 = vpop.f32.mrf.mxu0
    %v490 = vadd.f32 0.0, %v489
    %491 = vmatmul.f32.gmra.mxu0 %v435
    %v492 = vpop.f32.mrf.mxu0
    %v493 = vadd.f32 0.0, %v492
    %494 = vmatmul.f32.gmra.mxu0 %v437
    %v495 = vpop.f32.mrf.mxu0
    %v496 = vadd.f32 0.0, %v495
    %497 = vmatmul.f32.gmra.mxu0 %v439
    %v498 = vpop.f32.mrf.mxu0
    %v499 = vadd.f32 0.0, %v498
    %500 = vmatmul.f32.gmra.mxu0 %v441
    %v501 = vpop.f32.mrf.mxu0
    %v502 = vadd.f32 0.0, %v501
    %503 = vmatmul.f32.gmra.mxu0 %v443
    %v504 = vpop.f32.mrf.mxu0
    %v505 = vadd.f32 0.0, %v504
    %506 = vmatmul.f32.gmra.mxu0 %v445
    %v507 = vpop.f32.mrf.mxu0
    %v508 = vadd.f32 0.0, %v507
    %509 = vmatmul.f32.gmra.mxu0 %v447
    %v510 = vpop.f32.mrf.mxu0
    %v511 = vadd.f32 0.0, %v510
    %512 = vmatmul.f32.gmra.mxu0 %v449
    %v513 = vpop.f32.mrf.mxu0
    %v514 = vadd.f32 0.0, %v513
    %515 = vmatmul.f32.gmra.mxu0 %v451
    %v516 = vpop.f32.mrf.mxu0
    %v517 = vadd.f32 0.0, %v516
    %518 = vmatmul.f32.gmra.mxu0 %v453
    %v519 = vpop.f32.mrf.mxu0
    %v520 = vadd.f32 0.0, %v519
    %521 = vmatmul.f32.gmra.mxu0 %v455
    %v522 = vpop.f32.mrf.mxu0
    %v523 = vadd.f32 0.0, %v522
    %524 = vmatmul.f32.gmra.mxu0 %v457
    %v525 = vpop.f32.mrf.mxu0
    %v526 = vadd.f32 0.0, %v525
    %527 = vmatmul.f32.gmra.mxu0 %v459
    %v528 = vpop.f32.mrf.mxu0
    %v529 = vadd.f32 0.0, %v528
    %530 = vmatmul.f32.gmra.mxu0 %v461
    %v531 = vpop.f32.mrf.mxu0
    %v532 = vadd.f32 0.0, %v531
    %533 = vmatmul.f32.gmra.mxu0 %v463
    %v534 = vpop.f32.mrf.mxu0
    %v535 = vadd.f32 0.0, %v534
    %536 = vmatmul.f32.gmra.mxu0 %v465
    %v537 = vpop.f32.mrf.mxu0
    %v538 = vadd.f32 0.0, %v537
    %539 = vmatmul.f32.gmra.mxu0 %v467
    %v540 = vpop.f32.mrf.mxu0
    %v541 = vadd.f32 0.0, %v540
    %542 = vdwg.mxu0
    %v543 = vadd.f32 %v342, %v490
    %v544 = vadd.f32 %v345, %v493
    %v545 = vadd.f32 %v348, %v496
    %v546 = vadd.f32 %v351, %v499
    %v547 = vadd.f32 %v354, %v502
    %v548 = vadd.f32 %v357, %v505
    %v549 = vadd.f32 %v360, %v508
    %v550 = vadd.f32 %v363, %v511
    %v551 = vadd.f32 %v366, %v514
    %v552 = vadd.f32 %v369, %v517
    %v553 = vadd.f32 %v372, %v520
    %v554 = vadd.f32 %v375, %v523
    %v555 = vadd.f32 %v378, %v526
    %v556 = vadd.f32 %v381, %v529
    %v557 = vadd.f32 %v384, %v532
    %v558 = vadd.f32 %v387, %v535
    %v559 = vadd.f32 %v390, %v538
    %v560 = vadd.f32 %v393, %v541
    %v561 = vld [vmem:[%s2] sm:$0x1]
    %v563 = vperm.slane %v561, 0
    %v565 = vadd.f32 %v543, %v563
    %v566 = vadd.f32 %v544, %v563
    %v567 = vadd.f32 %v545, %v563
    %v568 = vadd.f32 %v546, %v563
    %v569 = vadd.f32 %v547, %v563
    %v570 = vadd.f32 %v548, %v563
    %v571 = vadd.f32 %v549, %v563
    %v572 = vadd.f32 %v550, %v563
    %v573 = vadd.f32 %v551, %v563
    %v574 = vadd.f32 %v552, %v563
    %v575 = vadd.f32 %v553, %v563
    %v576 = vadd.f32 %v554, %v563
    %v577 = vadd.f32 %v555, %v563
    %v578 = vadd.f32 %v556, %v563
    %v579 = vadd.f32 %v557, %v563
    %v580 = vadd.f32 %v558, %v563
    %v581 = vadd.f32 %v559, %v563
    %v582 = vadd.f32 %v560, %v563
    %v583 = vmax.f32 %v565, 0.0
    %v584 = vmax.f32 %v566, 0.0
    %v585 = vmax.f32 %v567, 0.0
    %v586 = vmax.f32 %v568, 0.0
    %v587 = vmax.f32 %v569, 0.0
    %v588 = vmax.f32 %v570, 0.0
    %v589 = vmax.f32 %v571, 0.0
    %v590 = vmax.f32 %v572, 0.0
    %v591 = vmax.f32 %v573, 0.0
    %v592 = vmax.f32 %v574, 0.0
    %v593 = vmax.f32 %v575, 0.0
    %v594 = vmax.f32 %v576, 0.0
    %v595 = vmax.f32 %v577, 0.0
    %v596 = vmax.f32 %v578, 0.0
    %v597 = vmax.f32 %v579, 0.0
    %v598 = vmax.f32 %v580, 0.0
    %v599 = vmax.f32 %v581, 0.0
    %v600 = vmax.f32 %v582, 0.0
    %v601 = vld [vmem:[%s9] sm:$0xff]
    %v602 = vld [vmem:[%s9 + $0x8] sm:$0xff]
    %v603 = vld [vmem:[%s9 + $0x10] sm:$0xff]
    %v604 = vld [vmem:[%s9 + $0x18] sm:$0xff]
    %v605 = vld [vmem:[%s9 + $0x20] sm:$0xff]
    %v606 = vld [vmem:[%s9 + $0x28] sm:$0xff]
    %v607 = vld [vmem:[%s9 + $0x30] sm:$0xff]
    %v608 = vld [vmem:[%s9 + $0x38] sm:$0xff]
    %v609 = vld [vmem:[%s9 + $0x40] sm:$0xff]
    %v610 = vld [vmem:[%s9 + $0x48] sm:$0xff]
    %v611 = vld [vmem:[%s9 + $0x50] sm:$0xff]
    %v612 = vld [vmem:[%s9 + $0x58] sm:$0xff]
    %v613 = vld [vmem:[%s9 + $0x60] sm:$0xff]
    %v614 = vld [vmem:[%s9 + $0x68] sm:$0xff]
    %v615 = vld [vmem:[%s9 + $0x70] sm:$0xff]
    %v616 = vld [vmem:[%s9 + $0x78] sm:$0xff]
    %v617 = vld [vmem:[%s9 + $0x80] sm:$0xff]
    %v618 = vld [vmem:[%s9 + $0x88] sm:$0xff]
    %v619 = vld [vmem:[%s9 + $0x90] sm:$0xff]
    %v620 = vld [vmem:[%s9 + $0x98] sm:$0xff]
    %v621 = vld [vmem:[%s9 + $0xa0] sm:$0xff]
    %v622 = vld [vmem:[%s9 + $0xa8] sm:$0xff]
    %v623 = vld [vmem:[%s9 + $0xb0] sm:$0xff]
    %v624 = vld [vmem:[%s9 + $0xb8] sm:$0xff]
    %v625 = vld [vmem:[%s9 + $0xc0] sm:$0xff]
    %v626 = vld [vmem:[%s9 + $0xc8] sm:$0xff]
    %v627 = vld [vmem:[%s9 + $0xd0] sm:$0xff]
    %v628 = vld [vmem:[%s9 + $0xd8] sm:$0xff]
    %v629 = vld [vmem:[%s9 + $0xe0] sm:$0xff]
    %v630 = vld [vmem:[%s9 + $0xe8] sm:$0xff]
    %v631 = vld [vmem:[%s9 + $0xf0] sm:$0xff]
    %v632 = vld [vmem:[%s9 + $0xf8] sm:$0xff]
    %v633 = vld [vmem:[%s9 + $0x100] sm:$0xff]
    %v634 = vld [vmem:[%s9 + $0x108] sm:$0xff]
    %v635 = vld [vmem:[%s9 + $0x110] sm:$0xff]
    %v636 = vld [vmem:[%s9 + $0x118] sm:$0xff]
    %vm637 = vcmask 113664
    %v639 = vsel %vm637, %v602, 0
    %v642 = vsel %vm637, %v604, 0
    %v645 = vsel %vm637, %v606, 0
    %v648 = vsel %vm637, %v608, 0
    %v651 = vsel %vm637, %v610, 0
    %v654 = vsel %vm637, %v612, 0
    %v657 = vsel %vm637, %v614, 0
    %v660 = vsel %vm637, %v616, 0
    %v663 = vsel %vm637, %v618, 0
    %v666 = vsel %vm637, %v620, 0
    %v669 = vsel %vm637, %v622, 0
    %v672 = vsel %vm637, %v624, 0
    %v675 = vsel %vm637, %v626, 0
    %v678 = vsel %vm637, %v628, 0
    %v681 = vsel %vm637, %v630, 0
    %v684 = vsel %vm637, %v632, 0
    %v687 = vsel %vm637, %v634, 0
    %v690 = vsel %vm637, %v636, 0
    %v693 = vsel %vm397, %v600, 0
    %695 = vmatpush.msra.mxu0 %v598
    %696 = vmatpush.msra.mxu0 %v597
    %697 = vmatpush.msra.mxu0 %v596
    %698 = vmatpush.msra.mxu0 %v595
    %699 = vmatpush.msra.mxu0 %v594
    %700 = vmatpush.msra.mxu0 %v593
    %701 = vmatpush.msra.mxu0 %v592
    %702 = vmatpush.msra.mxu0 %v591
    %703 = vmatpush.msra.mxu0 %v590
    %704 = vmatpush.msra.mxu0 %v589
    %705 = vmatpush.msra.mxu0 %v588
    %706 = vmatpush.msra.mxu0 %v587
    %707 = vmatpush.msra.mxu0 %v586
    %708 = vmatpush.msra.mxu0 %v585
    %709 = vmatpush.msra.mxu0 %v584
    %710 = vmatpush.msra.mxu0 %v583
    %711 = vmatmul.f32.gmra.mxu0 %v601
    %v712 = vpop.f32.mrf.mxu0
    %v713 = vadd.f32 0.0, %v712
    %714 = vmatmul.f32.gmra.mxu0 %v603
    %v715 = vpop.f32.mrf.mxu0
    %v716 = vadd.f32 0.0, %v715
    %717 = vmatmul.f32.gmra.mxu0 %v605
    %v718 = vpop.f32.mrf.mxu0
    %v719 = vadd.f32 0.0, %v718
    %720 = vmatmul.f32.gmra.mxu0 %v607
    %v721 = vpop.f32.mrf.mxu0
    %v722 = vadd.f32 0.0, %v721
    %723 = vmatmul.f32.gmra.mxu0 %v609
    %v724 = vpop.f32.mrf.mxu0
    %v725 = vadd.f32 0.0, %v724
    %726 = vmatmul.f32.gmra.mxu0 %v611
    %v727 = vpop.f32.mrf.mxu0
    %v728 = vadd.f32 0.0, %v727
    %729 = vmatmul.f32.gmra.mxu0 %v613
    %v730 = vpop.f32.mrf.mxu0
    %v731 = vadd.f32 0.0, %v730
    %732 = vmatmul.f32.gmra.mxu0 %v615
    %v733 = vpop.f32.mrf.mxu0
    %v734 = vadd.f32 0.0, %v733
    %735 = vmatmul.f32.gmra.mxu0 %v617
    %v736 = vpop.f32.mrf.mxu0
    %v737 = vadd.f32 0.0, %v736
    %738 = vmatmul.f32.gmra.mxu0 %v619
    %v739 = vpop.f32.mrf.mxu0
    %v740 = vadd.f32 0.0, %v739
    %741 = vmatmul.f32.gmra.mxu0 %v621
    %v742 = vpop.f32.mrf.mxu0
    %v743 = vadd.f32 0.0, %v742
    %744 = vmatmul.f32.gmra.mxu0 %v623
    %v745 = vpop.f32.mrf.mxu0
    %v746 = vadd.f32 0.0, %v745
    %747 = vmatmul.f32.gmra.mxu0 %v625
    %v748 = vpop.f32.mrf.mxu0
    %v749 = vadd.f32 0.0, %v748
    %750 = vmatmul.f32.gmra.mxu0 %v627
    %v751 = vpop.f32.mrf.mxu0
    %v752 = vadd.f32 0.0, %v751
    %753 = vmatmul.f32.gmra.mxu0 %v629
    %v754 = vpop.f32.mrf.mxu0
    %v755 = vadd.f32 0.0, %v754
    %756 = vmatmul.f32.gmra.mxu0 %v631
    %v757 = vpop.f32.mrf.mxu0
    %v758 = vadd.f32 0.0, %v757
    %759 = vmatmul.f32.gmra.mxu0 %v633
    %v760 = vpop.f32.mrf.mxu0
    %v761 = vadd.f32 0.0, %v760
    %762 = vmatmul.f32.gmra.mxu0 %v635
    %v763 = vpop.f32.mrf.mxu0
    %v764 = vadd.f32 0.0, %v763
    %765 = vdwg.mxu0
    %766 = vmatpush.msra.mxu0 0.0
    %767 = vmatpush.msra.mxu0 0.0
    %768 = vmatpush.msra.mxu0 0.0
    %769 = vmatpush.msra.mxu0 0.0
    %770 = vmatpush.msra.mxu0 0.0
    %771 = vmatpush.msra.mxu0 0.0
    %772 = vmatpush.msra.mxu0 0.0
    %773 = vmatpush.msra.mxu0 0.0
    %774 = vmatpush.msra.mxu0 0.0
    %775 = vmatpush.msra.mxu0 0.0
    %776 = vmatpush.msra.mxu0 0.0
    %777 = vmatpush.msra.mxu0 0.0
    %778 = vmatpush.msra.mxu0 0.0
    %779 = vmatpush.msra.mxu0 0.0
    %780 = vmatpush.msra.mxu0 %v693
    %781 = vmatpush.msra.mxu0 %v599
    %782 = vmatmul.f32.gmra.mxu0 %v639
    %v783 = vpop.f32.mrf.mxu0
    %v784 = vadd.f32 %v713, %v783
    %785 = vmatmul.f32.gmra.mxu0 %v642
    %v786 = vpop.f32.mrf.mxu0
    %v787 = vadd.f32 %v716, %v786
    %788 = vmatmul.f32.gmra.mxu0 %v645
    %v789 = vpop.f32.mrf.mxu0
    %v790 = vadd.f32 %v719, %v789
    %791 = vmatmul.f32.gmra.mxu0 %v648
    %v792 = vpop.f32.mrf.mxu0
    %v793 = vadd.f32 %v722, %v792
    %794 = vmatmul.f32.gmra.mxu0 %v651
    %v795 = vpop.f32.mrf.mxu0
    %v796 = vadd.f32 %v725, %v795
    %797 = vmatmul.f32.gmra.mxu0 %v654
    %v798 = vpop.f32.mrf.mxu0
    %v799 = vadd.f32 %v728, %v798
    %800 = vmatmul.f32.gmra.mxu0 %v657
    %v801 = vpop.f32.mrf.mxu0
    %v802 = vadd.f32 %v731, %v801
    %803 = vmatmul.f32.gmra.mxu0 %v660
    %v804 = vpop.f32.mrf.mxu0
    %v805 = vadd.f32 %v734, %v804
    %806 = vmatmul.f32.gmra.mxu0 %v663
    %v807 = vpop.f32.mrf.mxu0
    %v808 = vadd.f32 %v737, %v807
    %809 = vmatmul.f32.gmra.mxu0 %v666
    %v810 = vpop.f32.mrf.mxu0
    %v811 = vadd.f32 %v740, %v810
    %812 = vmatmul.f32.gmra.mxu0 %v669
    %v813 = vpop.f32.mrf.mxu0
    %v814 = vadd.f32 %v743, %v813
    %815 = vmatmul.f32.gmra.mxu0 %v672
    %v816 = vpop.f32.mrf.mxu0
    %v817 = vadd.f32 %v746, %v816
    %818 = vmatmul.f32.gmra.mxu0 %v675
    %v819 = vpop.f32.mrf.mxu0
    %v820 = vadd.f32 %v749, %v819
    %821 = vmatmul.f32.gmra.mxu0 %v678
    %v822 = vpop.f32.mrf.mxu0
    %v823 = vadd.f32 %v752, %v822
    %824 = vmatmul.f32.gmra.mxu0 %v681
    %v825 = vpop.f32.mrf.mxu0
    %v826 = vadd.f32 %v755, %v825
    %827 = vmatmul.f32.gmra.mxu0 %v684
    %v828 = vpop.f32.mrf.mxu0
    %v829 = vadd.f32 %v758, %v828
    %830 = vmatmul.f32.gmra.mxu0 %v687
    %v831 = vpop.f32.mrf.mxu0
    %v832 = vadd.f32 %v761, %v831
    %833 = vmatmul.f32.gmra.mxu0 %v690
    %v834 = vpop.f32.mrf.mxu0
    %v835 = vadd.f32 %v764, %v834
    %836 = vdwg.mxu0
    %v837 = vld [vmem:[#allocation5] sm:$0xff]
    %v838 = vld [vmem:[#allocation5 + $0x8] sm:$0xff]
    %v839 = vld [vmem:[#allocation5 + $0x10] sm:$0xff]
    %v840 = vld [vmem:[#allocation5 + $0x18] sm:$0xff]
    %s841 = scalar_lea.vmem [#allocation5], 32
    %v842 = vld [vmem:[%s841] sm:$0xff]
    %v843 = vld [vmem:[%s841 + $0x8] sm:$0xff]
    %v844 = vld [vmem:[%s841 + $0x10] sm:$0xff]
    %v845 = vld [vmem:[%s841 + $0x18] sm:$0xff]
    %v864 = vrot.slane %v784, 1
    %v865 = vrot.slane %v787, 1
    %v866 = vsel %vm137, %v864, %v865
    %v867 = vrot.slane %v790, 1
    %v868 = vsel %vm137, %v865, %v867
    %v869 = vrot.slane %v793, 1
    %v870 = vsel %vm137, %v867, %v869
    %v871 = vrot.slane %v796, 1
    %v872 = vsel %vm137, %v869, %v871
    %v873 = vrot.slane %v799, 1
    %v874 = vsel %vm137, %v871, %v873
    %v875 = vrot.slane %v802, 1
    %v876 = vsel %vm137, %v873, %v875
    %v877 = vrot.slane %v805, 1
    %v878 = vsel %vm137, %v875, %v877
    %v879 = vrot.slane %v808, 1
    %v880 = vsel %vm137, %v877, %v879
    %v881 = vrot.slane %v811, 1
    %v882 = vsel %vm137, %v879, %v881
    %v883 = vrot.slane %v814, 1
    %v884 = vsel %vm137, %v881, %v883
    %v885 = vrot.slane %v817, 1
    %v886 = vsel %vm137, %v883, %v885
    %v887 = vrot.slane %v820, 1
    %v888 = vsel %vm137, %v885, %v887
    %v889 = vrot.slane %v823, 1
    %v890 = vsel %vm137, %v887, %v889
    %v891 = vrot.slane %v826, 1
    %v892 = vsel %vm137, %v889, %v891
    %v893 = vrot.slane %v829, 1
    %v894 = vsel %vm137, %v891, %v893
    %v895 = vrot.slane %v832, 1
    %v896 = vsel %vm137, %v893, %v895
    %v897 = vrot.slane %v835, 1
    %v898 = vsel %vm137, %v895, %v897
    %vm899 = vcmask 261120
    %v900 = vsel %vm899, %v866, 0
    %v902 = vsel %vm899, %v868, 0
    %v904 = vsel %vm899, %v870, 0
    %v906 = vsel %vm899, %v872, 0
    %v908 = vsel %vm899, %v874, 0
    %v910 = vsel %vm899, %v876, 0
    %v912 = vsel %vm899, %v878, 0
    %v914 = vsel %vm899, %v880, 0
    %v916 = vsel %vm899, %v882, 0
    %v918 = vsel %vm899, %v884, 0
    %v920 = vsel %vm899, %v886, 0
    %v922 = vsel %vm899, %v888, 0
    %v924 = vsel %vm899, %v890, 0
    %v926 = vsel %vm899, %v892, 0
    %v928 = vsel %vm899, %v894, 0
    %v930 = vsel %vm899, %v896, 0
    %v932 = vsel %vm899, %v898, 0
    %v934 = vsel %vm899, %v897, 0
    %936 = vmatpush.msra.mxu0 0.0
    %937 = vmatpush.msra.mxu0 0.0
    %938 = vmatpush.msra.mxu0 0.0
    %939 = vmatpush.msra.mxu0 0.0
    %940 = vmatpush.msra.mxu0 0.0
    %941 = vmatpush.msra.mxu0 0.0
    %942 = vmatpush.msra.mxu0 0.0
    %943 = vmatpush.msra.mxu0 0.0
    %944 = vmatpush.msra.mxu0 0.0
    %945 = vmatpush.msra.mxu0 0.0
    %946 = vmatpush.msra.mxu0 0.0
    %947 = vmatpush.msra.mxu0 0.0
    %948 = vmatpush.msra.mxu0 %v845
    %949 = vmatpush.msra.mxu0 %v844
    %950 = vmatpush.msra.mxu0 %v843
    %951 = vmatpush.msra.mxu0 %v842
    %952 = vmatmul.f32.gmra.mxu0 %v900
    %v953 = vpop.f32.mrf.mxu0
    %v954 = vadd.f32 0.0, %v953
    %955 = vmatmul.f32.gmra.mxu0 %v902
    %v956 = vpop.f32.mrf.mxu0
    %v957 = vadd.f32 0.0, %v956
    %958 = vmatmul.f32.gmra.mxu0 %v904
    %v959 = vpop.f32.mrf.mxu0
    %v960 = vadd.f32 0.0, %v959
    %961 = vmatmul.f32.gmra.mxu0 %v906
    %v962 = vpop.f32.mrf.mxu0
    %v963 = vadd.f32 0.0, %v962
    %964 = vmatmul.f32.gmra.mxu0 %v908
    %v965 = vpop.f32.mrf.mxu0
    %v966 = vadd.f32 0.0, %v965
    %967 = vmatmul.f32.gmra.mxu0 %v910
    %v968 = vpop.f32.mrf.mxu0
    %v969 = vadd.f32 0.0, %v968
    %970 = vmatmul.f32.gmra.mxu0 %v912
    %v971 = vpop.f32.mrf.mxu0
    %v972 = vadd.f32 0.0, %v971
    %973 = vmatmul.f32.gmra.mxu0 %v914
    %v974 = vpop.f32.mrf.mxu0
    %v975 = vadd.f32 0.0, %v974
    %976 = vmatmul.f32.gmra.mxu0 %v916
    %v977 = vpop.f32.mrf.mxu0
    %v978 = vadd.f32 0.0, %v977
    %979 = vmatmul.f32.gmra.mxu0 %v918
    %v980 = vpop.f32.mrf.mxu0
    %v981 = vadd.f32 0.0, %v980
    %982 = vmatmul.f32.gmra.mxu0 %v920
    %v983 = vpop.f32.mrf.mxu0
    %v984 = vadd.f32 0.0, %v983
    %985 = vmatmul.f32.gmra.mxu0 %v922
    %v986 = vpop.f32.mrf.mxu0
    %v987 = vadd.f32 0.0, %v986
    %988 = vmatmul.f32.gmra.mxu0 %v924
    %v989 = vpop.f32.mrf.mxu0
    %v990 = vadd.f32 0.0, %v989
    %991 = vmatmul.f32.gmra.mxu0 %v926
    %v992 = vpop.f32.mrf.mxu0
    %v993 = vadd.f32 0.0, %v992
    %994 = vmatmul.f32.gmra.mxu0 %v928
    %v995 = vpop.f32.mrf.mxu0
    %v996 = vadd.f32 0.0, %v995
    %997 = vmatmul.f32.gmra.mxu0 %v930
    %v998 = vpop.f32.mrf.mxu0
    %v999 = vadd.f32 0.0, %v998
    %1000 = vmatmul.f32.gmra.mxu0 %v932
    %v1001 = vpop.f32.mrf.mxu0
    %v1002 = vadd.f32 0.0, %v1001
    %1003 = vmatmul.f32.gmra.mxu0 %v934
    %v1004 = vpop.f32.mrf.mxu0
    %v1005 = vadd.f32 0.0, %v1004
    %1006 = vdwg.mxu0
    %v1007 = vsel %vm899, %v784, 0
    %v1009 = vsel %vm899, %v787, 0
    %v1011 = vsel %vm899, %v790, 0
    %v1013 = vsel %vm899, %v793, 0
    %v1015 = vsel %vm899, %v796, 0
    %v1017 = vsel %vm899, %v799, 0
    %v1019 = vsel %vm899, %v802, 0
    %v1021 = vsel %vm899, %v805, 0
    %v1023 = vsel %vm899, %v808, 0
    %v1025 = vsel %vm899, %v811, 0
    %v1027 = vsel %vm899, %v814, 0
    %v1029 = vsel %vm899, %v817, 0
    %v1031 = vsel %vm899, %v820, 0
    %v1033 = vsel %vm899, %v823, 0
    %v1035 = vsel %vm899, %v826, 0
    %v1037 = vsel %vm899, %v829, 0
    %v1039 = vsel %vm899, %v832, 0
    %v1041 = vsel %vm899, %v835, 0
    %1043 = vmatpush.msra.mxu0 0.0
    %1044 = vmatpush.msra.mxu0 0.0
    %1045 = vmatpush.msra.mxu0 0.0
    %1046 = vmatpush.msra.mxu0 0.0
    %1047 = vmatpush.msra.mxu0 0.0
    %1048 = vmatpush.msra.mxu0 0.0
    %1049 = vmatpush.msra.mxu0 0.0
    %1050 = vmatpush.msra.mxu0 0.0
    %1051 = vmatpush.msra.mxu0 0.0
    %1052 = vmatpush.msra.mxu0 0.0
    %1053 = vmatpush.msra.mxu0 0.0
    %1054 = vmatpush.msra.mxu0 0.0
    %1055 = vmatpush.msra.mxu0 %v840
    %1056 = vmatpush.msra.mxu0 %v839
    %1057 = vmatpush.msra.mxu0 %v838
    %1058 = vmatpush.msra.mxu0 %v837
    %1059 = vmatmul.f32.gmra.mxu0 %v1007
    %v1060 = vpop.f32.mrf.mxu0
    %v1061 = vadd.f32 %v954, %v1060
    %1062 = vmatmul.f32.gmra.mxu0 %v1009
    %v1063 = vpop.f32.mrf.mxu0
    %v1064 = vadd.f32 %v957, %v1063
    %1065 = vmatmul.f32.gmra.mxu0 %v1011
    %v1066 = vpop.f32.mrf.mxu0
    %v1067 = vadd.f32 %v960, %v1066
    %1068 = vmatmul.f32.gmra.mxu0 %v1013
    %v1069 = vpop.f32.mrf.mxu0
    %v1070 = vadd.f32 %v963, %v1069
    %1071 = vmatmul.f32.gmra.mxu0 %v1015
    %v1072 = vpop.f32.mrf.mxu0
    %v1073 = vadd.f32 %v966, %v1072
    %1074 = vmatmul.f32.gmra.mxu0 %v1017
    %v1075 = vpop.f32.mrf.mxu0
    %v1076 = vadd.f32 %v969, %v1075
    %1077 = vmatmul.f32.gmra.mxu0 %v1019
    %v1078 = vpop.f32.mrf.mxu0
    %v1079 = vadd.f32 %v972, %v1078
    %1080 = vmatmul.f32.gmra.mxu0 %v1021
    %v1081 = vpop.f32.mrf.mxu0
    %v1082 = vadd.f32 %v975, %v1081
    %1083 = vmatmul.f32.gmra.mxu0 %v1023
    %v1084 = vpop.f32.mrf.mxu0
    %v1085 = vadd.f32 %v978, %v1084
    %1086 = vmatmul.f32.gmra.mxu0 %v1025
    %v1087 = vpop.f32.mrf.mxu0
    %v1088 = vadd.f32 %v981, %v1087
    %1089 = vmatmul.f32.gmra.mxu0 %v1027
    %v1090 = vpop.f32.mrf.mxu0
    %v1091 = vadd.f32 %v984, %v1090
    %1092 = vmatmul.f32.gmra.mxu0 %v1029
    %v1093 = vpop.f32.mrf.mxu0
    %v1094 = vadd.f32 %v987, %v1093
    %1095 = vmatmul.f32.gmra.mxu0 %v1031
    %v1096 = vpop.f32.mrf.mxu0
    %v1097 = vadd.f32 %v990, %v1096
    %1098 = vmatmul.f32.gmra.mxu0 %v1033
    %v1099 = vpop.f32.mrf.mxu0
    %v1100 = vadd.f32 %v993, %v1099
    %1101 = vmatmul.f32.gmra.mxu0 %v1035
    %v1102 = vpop.f32.mrf.mxu0
    %v1103 = vadd.f32 %v996, %v1102
    %1104 = vmatmul.f32.gmra.mxu0 %v1037
    %v1105 = vpop.f32.mrf.mxu0
    %v1106 = vadd.f32 %v999, %v1105
    %1107 = vmatmul.f32.gmra.mxu0 %v1039
    %v1108 = vpop.f32.mrf.mxu0
    %v1109 = vadd.f32 %v1002, %v1108
    %1110 = vmatmul.f32.gmra.mxu0 %v1041
    %v1111 = vpop.f32.mrf.mxu0
    %v1112 = vadd.f32 %v1005, %v1111
    %1113 = vdwg.mxu0
    %v1114 = vld [vmem:[%s4] sm:$0x1]
    %v1116 = vperm.slane %v1114, 0
    %v1118 = vadd.f32 %v1061, %v1116
    %v1119 = vadd.f32 %v1064, %v1116
    %v1120 = vadd.f32 %v1067, %v1116
    %v1121 = vadd.f32 %v1070, %v1116
    %v1122 = vadd.f32 %v1073, %v1116
    %v1123 = vadd.f32 %v1076, %v1116
    %v1124 = vadd.f32 %v1079, %v1116
    %v1125 = vadd.f32 %v1082, %v1116
    %v1126 = vadd.f32 %v1085, %v1116
    %v1127 = vadd.f32 %v1088, %v1116
    %v1128 = vadd.f32 %v1091, %v1116
    %v1129 = vadd.f32 %v1094, %v1116
    %v1130 = vadd.f32 %v1097, %v1116
    %v1131 = vadd.f32 %v1100, %v1116
    %v1132 = vadd.f32 %v1103, %v1116
    %v1133 = vadd.f32 %v1106, %v1116
    %v1134 = vadd.f32 %v1109, %v1116
    %v1135 = vadd.f32 %v1112, %v1116
    %v1136 = vmax.f32 %v1118, 0.0
    %v1137 = vmax.f32 %v1119, 0.0
    %v1138 = vmax.f32 %v1120, 0.0
    %v1139 = vmax.f32 %v1121, 0.0
    %v1140 = vmax.f32 %v1122, 0.0
    %v1141 = vmax.f32 %v1123, 0.0
    %v1142 = vmax.f32 %v1124, 0.0
    %v1143 = vmax.f32 %v1125, 0.0
    %v1144 = vmax.f32 %v1126, 0.0
    %v1145 = vmax.f32 %v1127, 0.0
    %v1146 = vmax.f32 %v1128, 0.0
    %v1147 = vmax.f32 %v1129, 0.0
    %v1148 = vmax.f32 %v1130, 0.0
    %v1149 = vmax.f32 %v1131, 0.0
    %v1150 = vmax.f32 %v1132, 0.0
    %v1151 = vmax.f32 %v1133, 0.0
    %v1152 = vmax.f32 %v1134, 0.0
    %v1153 = vmax.f32 %v1135, 0.0
    %v1172 = vrot.slane %v1136, 1
    %v1173 = vrot.slane %v1137, 1
    %v1174 = vsel %vm137, %v1172, %v1173
    %v1175 = vrot.slane %v1138, 1
    %v1176 = vsel %vm137, %v1173, %v1175
    %v1177 = vrot.slane %v1139, 1
    %v1178 = vsel %vm137, %v1175, %v1177
    %v1179 = vrot.slane %v1140, 1
    %v1180 = vsel %vm137, %v1177, %v1179
    %v1181 = vrot.slane %v1141, 1
    %v1182 = vsel %vm137, %v1179, %v1181
    %v1183 = vrot.slane %v1142, 1
    %v1184 = vsel %vm137, %v1181, %v1183
    %v1185 = vrot.slane %v1143, 1
    %v1186 = vsel %vm137, %v1183, %v1185
    %v1187 = vrot.slane %v1144, 1
    %v1188 = vsel %vm137, %v1185, %v1187
    %v1189 = vrot.slane %v1145, 1
    %v1190 = vsel %vm137, %v1187, %v1189
    %v1191 = vrot.slane %v1146, 1
    %v1192 = vsel %vm137, %v1189, %v1191
    %v1193 = vrot.slane %v1147, 1
    %v1194 = vsel %vm137, %v1191, %v1193
    %v1195 = vrot.slane %v1148, 1
    %v1196 = vsel %vm137, %v1193, %v1195
    %v1197 = vrot.slane %v1149, 1
    %v1198 = vsel %vm137, %v1195, %v1197
    %v1199 = vrot.slane %v1150, 1
    %v1200 = vsel %vm137, %v1197, %v1199
    %v1201 = vrot.slane %v1151, 1
    %v1202 = vsel %vm137, %v1199, %v1201
    %v1203 = vrot.slane %v1152, 1
    %v1204 = vsel %vm137, %v1201, %v1203
    %v1205 = vrot.slane %v1153, 1
    %v1206 = vsel %vm137, %v1203, %v1205
    %v1225 = vmax.f32 %v1136, %v1174
    %v1226 = vmax.f32 %v1137, %v1176
    %v1227 = vmax.f32 %v1138, %v1178
    %v1228 = vmax.f32 %v1139, %v1180
    %v1229 = vmax.f32 %v1140, %v1182
    %v1230 = vmax.f32 %v1141, %v1184
    %v1231 = vmax.f32 %v1142, %v1186
    %v1232 = vmax.f32 %v1143, %v1188
    %v1233 = vmax.f32 %v1144, %v1190
    %v1234 = vmax.f32 %v1145, %v1192
    %v1235 = vmax.f32 %v1146, %v1194
    %v1236 = vmax.f32 %v1147, %v1196
    %v1237 = vmax.f32 %v1148, %v1198
    %v1238 = vmax.f32 %v1149, %v1200
    %v1239 = vmax.f32 %v1150, %v1202
    %v1240 = vmax.f32 %v1151, %v1204
    %v1241 = vmax.f32 %v1152, %v1206
    %v1242 = vmax.f32 %v1153, %v1205
    %v1243 = vld [vmem:[%s10] sm:$0xff]
    %v1244 = vld [vmem:[%s10 + $0x8] sm:$0xff]
    %v1245 = vld [vmem:[%s10 + $0x10] sm:$0xff]
    %v1246 = vld [vmem:[%s10 + $0x18] sm:$0xff]
    %v1247 = vld [vmem:[%s10 + $0x20] sm:$0xff]
    %v1248 = vld [vmem:[%s10 + $0x28] sm:$0xff]
    %v1249 = vld [vmem:[%s10 + $0x30] sm:$0xff]
    %v1250 = vld [vmem:[%s10 + $0x38] sm:$0xff]
    %v1251 = vld [vmem:[%s10 + $0x40] sm:$0xff]
    %v1252 = vld [vmem:[%s10 + $0x48] sm:$0xff]
    %v1253 = vld [vmem:[%s10 + $0x50] sm:$0xff]
    %v1254 = vld [vmem:[%s10 + $0x58] sm:$0xff]
    %v1255 = vld [vmem:[%s10 + $0x60] sm:$0xff]
    %v1256 = vld [vmem:[%s10 + $0x68] sm:$0xff]
    %v1257 = vld [vmem:[%s10 + $0x70] sm:$0xff]
    %v1258 = vld [vmem:[%s10 + $0x78] sm:$0xff]
    %v1259 = vld [vmem:[%s10 + $0x80] sm:$0xff]
    %v1260 = vld [vmem:[%s10 + $0x88] sm:$0xff]
    %v1261 = vld [vmem:[%s10 + $0x90] sm:$0xff]
    %v1262 = vld [vmem:[%s10 + $0x98] sm:$0xff]
    %v1264 = vsel %vm637, %v1244, 0
    %v1267 = vsel %vm637, %v1246, 0
    %v1270 = vsel %vm637, %v1248, 0
    %v1273 = vsel %vm637, %v1250, 0
    %v1276 = vsel %vm637, %v1252, 0
    %v1279 = vsel %vm637, %v1254, 0
    %v1282 = vsel %vm637, %v1256, 0
    %v1285 = vsel %vm637, %v1258, 0
    %v1288 = vsel %vm637, %v1260, 0
    %v1291 = vsel %vm637, %v1262, 0
    %v1294 = vsel %vm397, %v1242, 0
    %1296 = vmatpush.msra.mxu0 %v1240
    %1297 = vmatpush.msra.mxu0 %v1239
    %1298 = vmatpush.msra.mxu0 %v1238
    %1299 = vmatpush.msra.mxu0 %v1237
    %1300 = vmatpush.msra.mxu0 %v1236
    %1301 = vmatpush.msra.mxu0 %v1235
    %1302 = vmatpush.msra.mxu0 %v1234
    %1303 = vmatpush.msra.mxu0 %v1233
    %1304 = vmatpush.msra.mxu0 %v1232
    %1305 = vmatpush.msra.mxu0 %v1231
    %1306 = vmatpush.msra.mxu0 %v1230
    %1307 = vmatpush.msra.mxu0 %v1229
    %1308 = vmatpush.msra.mxu0 %v1228
    %1309 = vmatpush.msra.mxu0 %v1227
    %1310 = vmatpush.msra.mxu0 %v1226
    %1311 = vmatpush.msra.mxu0 %v1225
    %1312 = vmatmul.f32.gmra.mxu0 %v1243
    %v1313 = vpop.f32.mrf.mxu0
    %v1314 = vadd.f32 0.0, %v1313
    %1315 = vmatmul.f32.gmra.mxu0 %v1245
    %v1316 = vpop.f32.mrf.mxu0
    %v1317 = vadd.f32 0.0, %v1316
    %1318 = vmatmul.f32.gmra.mxu0 %v1247
    %v1319 = vpop.f32.mrf.mxu0
    %v1320 = vadd.f32 0.0, %v1319
    %1321 = vmatmul.f32.gmra.mxu0 %v1249
    %v1322 = vpop.f32.mrf.mxu0
    %v1323 = vadd.f32 0.0, %v1322
    %1324 = vmatmul.f32.gmra.mxu0 %v1251
    %v1325 = vpop.f32.mrf.mxu0
    %v1326 = vadd.f32 0.0, %v1325
    %1327 = vmatmul.f32.gmra.mxu0 %v1253
    %v1328 = vpop.f32.mrf.mxu0
    %v1329 = vadd.f32 0.0, %v1328
    %1330 = vmatmul.f32.gmra.mxu0 %v1255
    %v1331 = vpop.f32.mrf.mxu0
    %v1332 = vadd.f32 0.0, %v1331
    %1333 = vmatmul.f32.gmra.mxu0 %v1257
    %v1334 = vpop.f32.mrf.mxu0
    %v1335 = vadd.f32 0.0, %v1334
    %1336 = vmatmul.f32.gmra.mxu0 %v1259
    %v1337 = vpop.f32.mrf.mxu0
    %v1338 = vadd.f32 0.0, %v1337
    %1339 = vmatmul.f32.gmra.mxu0 %v1261
    %v1340 = vpop.f32.mrf.mxu0
    %v1341 = vadd.f32 0.0, %v1340
    %1342 = vdwg.mxu0
    %1343 = vmatpush.msra.mxu0 0.0
    %1344 = vmatpush.msra.mxu0 0.0
    %1345 = vmatpush.msra.mxu0 0.0
    %1346 = vmatpush.msra.mxu0 0.0
    %1347 = vmatpush.msra.mxu0 0.0
    %1348 = vmatpush.msra.mxu0 0.0
    %1349 = vmatpush.msra.mxu0 0.0
    %1350 = vmatpush.msra.mxu0 0.0
    %1351 = vmatpush.msra.mxu0 0.0
    %1352 = vmatpush.msra.mxu0 0.0
    %1353 = vmatpush.msra.mxu0 0.0
    %1354 = vmatpush.msra.mxu0 0.0
    %1355 = vmatpush.msra.mxu0 0.0
    %1356 = vmatpush.msra.mxu0 0.0
    %1357 = vmatpush.msra.mxu0 %v1294
    %1358 = vmatpush.msra.mxu0 %v1241
    %1359 = vmatmul.f32.gmra.mxu0 %v1264
    %v1360 = vpop.f32.mrf.mxu0
    %v1361 = vadd.f32 %v1314, %v1360
    %1362 = vmatmul.f32.gmra.mxu0 %v1267
    %v1363 = vpop.f32.mrf.mxu0
    %v1364 = vadd.f32 %v1317, %v1363
    %1365 = vmatmul.f32.gmra.mxu0 %v1270
    %v1366 = vpop.f32.mrf.mxu0
    %v1367 = vadd.f32 %v1320, %v1366
    %1368 = vmatmul.f32.gmra.mxu0 %v1273
    %v1369 = vpop.f32.mrf.mxu0
    %v1370 = vadd.f32 %v1323, %v1369
    %1371 = vmatmul.f32.gmra.mxu0 %v1276
    %v1372 = vpop.f32.mrf.mxu0
    %v1373 = vadd.f32 %v1326, %v1372
    %1374 = vmatmul.f32.gmra.mxu0 %v1279
    %v1375 = vpop.f32.mrf.mxu0
    %v1376 = vadd.f32 %v1329, %v1375
    %1377 = vmatmul.f32.gmra.mxu0 %v1282
    %v1378 = vpop.f32.mrf.mxu0
    %v1379 = vadd.f32 %v1332, %v1378
    %1380 = vmatmul.f32.gmra.mxu0 %v1285
    %v1381 = vpop.f32.mrf.mxu0
    %v1382 = vadd.f32 %v1335, %v1381
    %1383 = vmatmul.f32.gmra.mxu0 %v1288
    %v1384 = vpop.f32.mrf.mxu0
    %v1385 = vadd.f32 %v1338, %v1384
    %1386 = vmatmul.f32.gmra.mxu0 %v1291
    %v1387 = vpop.f32.mrf.mxu0
    %v1388 = vadd.f32 %v1341, %v1387
    %1389 = vdwg.mxu0
    %v1390 = vld [vmem:[%s5] sm:$0xff]
    %v1391 = vld [vmem:[%s5 + $0x8] sm:$0xff]
    %v1392 = vld [vmem:[%s5 + $0x10] sm:$0xff]
    %v1393 = vld [vmem:[%s5 + $0x18] sm:$0xff]
    %s1394 = scalar_lea.vmem %s5, 32
    %v1395 = vld [vmem:[%s1394] sm:$0xff]
    %v1396 = vld [vmem:[%s1394 + $0x8] sm:$0xff]
    %v1397 = vld [vmem:[%s1394 + $0x10] sm:$0xff]
    %v1398 = vld [vmem:[%s1394 + $0x18] sm:$0xff]
    %v1409 = vrot.slane %v1361, 1
    %v1410 = vrot.slane %v1364, 1
    %v1411 = vsel %vm137, %v1409, %v1410
    %v1412 = vrot.slane %v1367, 1
    %v1413 = vsel %vm137, %v1410, %v1412
    %v1414 = vrot.slane %v1370, 1
    %v1415 = vsel %vm137, %v1412, %v1414
    %v1416 = vrot.slane %v1373, 1
    %v1417 = vsel %vm137, %v1414, %v1416
    %v1418 = vrot.slane %v1376, 1
    %v1419 = vsel %vm137, %v1416, %v1418
    %v1420 = vrot.slane %v1379, 1
    %v1421 = vsel %vm137, %v1418, %v1420
    %v1422 = vrot.slane %v1382, 1
    %v1423 = vsel %vm137, %v1420, %v1422
    %v1424 = vrot.slane %v1385, 1
    %v1425 = vsel %vm137, %v1422, %v1424
    %v1426 = vrot.slane %v1388, 1
    %v1427 = vsel %vm137, %v1424, %v1426
    %v1428 = vsel %vm899, %v1411, 0
    %v1430 = vsel %vm899, %v1413, 0
    %v1432 = vsel %vm899, %v1415, 0
    %v1434 = vsel %vm899, %v1417, 0
    %v1436 = vsel %vm899, %v1419, 0
    %v1438 = vsel %vm899, %v1421, 0
    %v1440 = vsel %vm899, %v1423, 0
    %v1442 = vsel %vm899, %v1425, 0
    %v1444 = vsel %vm899, %v1427, 0
    %v1446 = vsel %vm899, %v1426, 0
    %1448 = vmatpush.msra.mxu0 0.0
    %1449 = vmatpush.msra.mxu0 0.0
    %1450 = vmatpush.msra.mxu0 0.0
    %1451 = vmatpush.msra.mxu0 0.0
    %1452 = vmatpush.msra.mxu0 0.0
    %1453 = vmatpush.msra.mxu0 0.0
    %1454 = vmatpush.msra.mxu0 0.0
    %1455 = vmatpush.msra.mxu0 0.0
    %1456 = vmatpush.msra.mxu0 0.0
    %1457 = vmatpush.msra.mxu0 0.0
    %1458 = vmatpush.msra.mxu0 0.0
    %1459 = vmatpush.msra.mxu0 0.0
    %1460 = vmatpush.msra.mxu0 %v1398
    %1461 = vmatpush.msra.mxu0 %v1397
    %1462 = vmatpush.msra.mxu0 %v1396
    %1463 = vmatpush.msra.mxu0 %v1395
    %1464 = vmatmul.f32.gmra.mxu0 %v1428
    %v1465 = vpop.f32.mrf.mxu0
    %v1466 = vadd.f32 0.0, %v1465
    %1467 = vmatmul.f32.gmra.mxu0 %v1430
    %v1468 = vpop.f32.mrf.mxu0
    %v1469 = vadd.f32 0.0, %v1468
    %1470 = vmatmul.f32.gmra.mxu0 %v1432
    %v1471 = vpop.f32.mrf.mxu0
    %v1472 = vadd.f32 0.0, %v1471
    %1473 = vmatmul.f32.gmra.mxu0 %v1434
    %v1474 = vpop.f32.mrf.mxu0
    %v1475 = vadd.f32 0.0, %v1474
    %1476 = vmatmul.f32.gmra.mxu0 %v1436
    %v1477 = vpop.f32.mrf.mxu0
    %v1478 = vadd.f32 0.0, %v1477
    %1479 = vmatmul.f32.gmra.mxu0 %v1438
    %v1480 = vpop.f32.mrf.mxu0
    %v1481 = vadd.f32 0.0, %v1480
    %1482 = vmatmul.f32.gmra.mxu0 %v1440
    %v1483 = vpop.f32.mrf.mxu0
    %v1484 = vadd.f32 0.0, %v1483
    %1485 = vmatmul.f32.gmra.mxu0 %v1442
    %v1486 = vpop.f32.mrf.mxu0
    %v1487 = vadd.f32 0.0, %v1486
    %1488 = vmatmul.f32.gmra.mxu0 %v1444
    %v1489 = vpop.f32.mrf.mxu0
    %v1490 = vadd.f32 0.0, %v1489
    %1491 = vmatmul.f32.gmra.mxu0 %v1446
    %v1492 = vpop.f32.mrf.mxu0
    %v1493 = vadd.f32 0.0, %v1492
    %1494 = vdwg.mxu0
    %v1495 = vsel %vm899, %v1361, 0
    %v1497 = vsel %vm899, %v1364, 0
    %v1499 = vsel %vm899, %v1367, 0
    %v1501 = vsel %vm899, %v1370, 0
    %v1503 = vsel %vm899, %v1373, 0
    %v1505 = vsel %vm899, %v1376, 0
    %v1507 = vsel %vm899, %v1379, 0
    %v1509 = vsel %vm899, %v1382, 0
    %v1511 = vsel %vm899, %v1385, 0
    %v1513 = vsel %vm899, %v1388, 0
    %1515 = vmatpush.msra.mxu0 0.0
    %1516 = vmatpush.msra.mxu0 0.0
    %1517 = vmatpush.msra.mxu0 0.0
    %1518 = vmatpush.msra.mxu0 0.0
    %1519 = vmatpush.msra.mxu0 0.0
    %1520 = vmatpush.msra.mxu0 0.0
    %1521 = vmatpush.msra.mxu0 0.0
    %1522 = vmatpush.msra.mxu0 0.0
    %1523 = vmatpush.msra.mxu0 0.0
    %1524 = vmatpush.msra.mxu0 0.0
    %1525 = vmatpush.msra.mxu0 0.0
    %1526 = vmatpush.msra.mxu0 0.0
    %1527 = vmatpush.msra.mxu0 %v1393
    %1528 = vmatpush.msra.mxu0 %v1392
    %1529 = vmatpush.msra.mxu0 %v1391
    %1530 = vmatpush.msra.mxu0 %v1390
    %1531 = vmatmul.f32.gmra.mxu0 %v1495
    %v1532 = vpop.f32.mrf.mxu0
    %v1533 = vadd.f32 %v1466, %v1532
    %1534 = vmatmul.f32.gmra.mxu0 %v1497
    %v1535 = vpop.f32.mrf.mxu0
    %v1536 = vadd.f32 %v1469, %v1535
    %1537 = vmatmul.f32.gmra.mxu0 %v1499
    %v1538 = vpop.f32.mrf.mxu0
    %v1539 = vadd.f32 %v1472, %v1538
    %1540 = vmatmul.f32.gmra.mxu0 %v1501
    %v1541 = vpop.f32.mrf.mxu0
    %v1542 = vadd.f32 %v1475, %v1541
    %1543 = vmatmul.f32.gmra.mxu0 %v1503
    %v1544 = vpop.f32.mrf.mxu0
    %v1545 = vadd.f32 %v1478, %v1544
    %1546 = vmatmul.f32.gmra.mxu0 %v1505
    %v1547 = vpop.f32.mrf.mxu0
    %v1548 = vadd.f32 %v1481, %v1547
    %1549 = vmatmul.f32.gmra.mxu0 %v1507
    %v1550 = vpop.f32.mrf.mxu0
    %v1551 = vadd.f32 %v1484, %v1550
    %1552 = vmatmul.f32.gmra.mxu0 %v1509
    %v1553 = vpop.f32.mrf.mxu0
    %v1554 = vadd.f32 %v1487, %v1553
    %1555 = vmatmul.f32.gmra.mxu0 %v1511
    %v1556 = vpop.f32.mrf.mxu0
    %v1557 = vadd.f32 %v1490, %v1556
    %1558 = vmatmul.f32.gmra.mxu0 %v1513
    %v1559 = vpop.f32.mrf.mxu0
    %v1560 = vadd.f32 %v1493, %v1559
    %1561 = vdwg.mxu0
    %s1562 = scalar_lea.vmem %s5, 64
    %v1563 = vld [vmem:[%s1562] sm:$0xff]
    %v1564 = vld [vmem:[%s1562 + $0x8] sm:$0xff]
    %v1565 = vld [vmem:[%s1562 + $0x10] sm:$0xff]
    %v1566 = vld [vmem:[%s1562 + $0x18] sm:$0xff]
    %v1567 = vrot.slane %v1361, 2
    %v1568 = vrot.slane %v1364, 2
    %v1569 = vsel %vm397, %v1567, %v1568
    %v1570 = vrot.slane %v1367, 2
    %v1571 = vsel %vm397, %v1568, %v1570
    %v1572 = vrot.slane %v1370, 2
    %v1573 = vsel %vm397, %v1570, %v1572
    %v1574 = vrot.slane %v1373, 2
    %v1575 = vsel %vm397, %v1572, %v1574
    %v1576 = vrot.slane %v1376, 2
    %v1577 = vsel %vm397, %v1574, %v1576
    %v1578 = vrot.slane %v1379, 2
    %v1579 = vsel %vm397, %v1576, %v1578
    %v1580 = vrot.slane %v1382, 2
    %v1581 = vsel %vm397, %v1578, %v1580
    %v1582 = vrot.slane %v1385, 2
    %v1583 = vsel %vm397, %v1580, %v1582
    %v1584 = vrot.slane %v1388, 2
    %v1585 = vsel %vm397, %v1582, %v1584
    %v1586 = vsel %vm899, %v1569, 0
    %v1588 = vsel %vm899, %v1571, 0
    %v1590 = vsel %vm899, %v1573, 0
    %v1592 = vsel %vm899, %v1575, 0
    %v1594 = vsel %vm899, %v1577, 0
    %v1596 = vsel %vm899, %v1579, 0
    %v1598 = vsel %vm899, %v1581, 0
    %v1600 = vsel %vm899, %v1583, 0
    %v1602 = vsel %vm899, %v1585, 0
    %v1604 = vsel %vm899, %v1584, 0
    %1606 = vmatpush.msra.mxu0 0.0
    %1607 = vmatpush.msra.mxu0 0.0
    %1608 = vmatpush.msra.mxu0 0.0
    %1609 = vmatpush.msra.mxu0 0.0
    %1610 = vmatpush.msra.mxu0 0.0
    %1611 = vmatpush.msra.mxu0 0.0
    %1612 = vmatpush.msra.mxu0 0.0
    %1613 = vmatpush.msra.mxu0 0.0
    %1614 = vmatpush.msra.mxu0 0.0
    %1615 = vmatpush.msra.mxu0 0.0
    %1616 = vmatpush.msra.mxu0 0.0
    %1617 = vmatpush.msra.mxu0 0.0
    %1618 = vmatpush.msra.mxu0 %v1566
    %1619 = vmatpush.msra.mxu0 %v1565
    %1620 = vmatpush.msra.mxu0 %v1564
    %1621 = vmatpush.msra.mxu0 %v1563
    %1622 = vmatmul.f32.gmra.mxu0 %v1586
    %v1623 = vpop.f32.mrf.mxu0
    %v1624 = vadd.f32 0.0, %v1623
    %1625 = vmatmul.f32.gmra.mxu0 %v1588
    %v1626 = vpop.f32.mrf.mxu0
    %v1627 = vadd.f32 0.0, %v1626
    %1628 = vmatmul.f32.gmra.mxu0 %v1590
    %v1629 = vpop.f32.mrf.mxu0
    %v1630 = vadd.f32 0.0, %v1629
    %1631 = vmatmul.f32.gmra.mxu0 %v1592
    %v1632 = vpop.f32.mrf.mxu0
    %v1633 = vadd.f32 0.0, %v1632
    %1634 = vmatmul.f32.gmra.mxu0 %v1594
    %v1635 = vpop.f32.mrf.mxu0
    %v1636 = vadd.f32 0.0, %v1635
    %1637 = vmatmul.f32.gmra.mxu0 %v1596
    %v1638 = vpop.f32.mrf.mxu0
    %v1639 = vadd.f32 0.0, %v1638
    %1640 = vmatmul.f32.gmra.mxu0 %v1598
    %v1641 = vpop.f32.mrf.mxu0
    %v1642 = vadd.f32 0.0, %v1641
    %1643 = vmatmul.f32.gmra.mxu0 %v1600
    %v1644 = vpop.f32.mrf.mxu0
    %v1645 = vadd.f32 0.0, %v1644
    %1646 = vmatmul.f32.gmra.mxu0 %v1602
    %v1647 = vpop.f32.mrf.mxu0
    %v1648 = vadd.f32 0.0, %v1647
    %1649 = vmatmul.f32.gmra.mxu0 %v1604
    %v1650 = vpop.f32.mrf.mxu0
    %v1651 = vadd.f32 0.0, %v1650
    %1652 = vdwg.mxu0
    %v1653 = vadd.f32 %v1533, %v1624
    %v1654 = vadd.f32 %v1536, %v1627
    %v1655 = vadd.f32 %v1539, %v1630
    %v1656 = vadd.f32 %v1542, %v1633
    %v1657 = vadd.f32 %v1545, %v1636
    %v1658 = vadd.f32 %v1548, %v1639
    %v1659 = vadd.f32 %v1551, %v1642
    %v1660 = vadd.f32 %v1554, %v1645
    %v1661 = vadd.f32 %v1557, %v1648
    %v1662 = vadd.f32 %v1560, %v1651
    %v1663 = vld [vmem:[%s6] sm:$0x1]
    %v1665 = vperm.slane %v1663, 0
    %v1667 = vadd.f32 %v1653, %v1665
    %v1668 = vadd.f32 %v1654, %v1665
    %v1669 = vadd.f32 %v1655, %v1665
    %v1670 = vadd.f32 %v1656, %v1665
    %v1671 = vadd.f32 %v1657, %v1665
    %v1672 = vadd.f32 %v1658, %v1665
    %v1673 = vadd.f32 %v1659, %v1665
    %v1674 = vadd.f32 %v1660, %v1665
    %v1675 = vadd.f32 %v1661, %v1665
    %v1676 = vadd.f32 %v1662, %v1665
    %v1677 = vmax.f32 %v1667, 0.0
    %v1678 = vmax.f32 %v1668, 0.0
    %v1679 = vmax.f32 %v1669, 0.0
    %v1680 = vmax.f32 %v1670, 0.0
    %v1681 = vmax.f32 %v1671, 0.0
    %v1682 = vmax.f32 %v1672, 0.0
    %v1683 = vmax.f32 %v1673, 0.0
    %v1684 = vmax.f32 %v1674, 0.0
    %v1685 = vmax.f32 %v1675, 0.0
    %v1686 = vmax.f32 %v1676, 0.0
    %v1687 = vld [vmem:[%s11] sm:$0xff]
    %v1688 = vld [vmem:[%s11 + $0x8] sm:$0xff]
    %v1689 = vld [vmem:[%s11 + $0x10] sm:$0xff]
    %v1690 = vld [vmem:[%s11 + $0x18] sm:$0xff]
    %v1691 = vld [vmem:[%s11 + $0x20] sm:$0xff]
    %v1692 = vld [vmem:[%s11 + $0x28] sm:$0xff]
    %v1693 = vld [vmem:[%s11 + $0x30] sm:$0xff]
    %v1694 = vld [vmem:[%s11 + $0x38] sm:$0xff]
    %v1695 = vld [vmem:[%s11 + $0x40] sm:$0xff]
    %v1696 = vld [vmem:[%s11 + $0x48] sm:$0xff]
    %vm1697 = vcmask 637952
    %v1699 = vsel %vm1697, %v1687, 0
    %v1702 = vsel %vm1697, %v1688, 0
    %v1705 = vsel %vm1697, %v1689, 0
    %v1708 = vsel %vm1697, %v1690, 0
    %v1711 = vsel %vm1697, %v1691, 0
    %v1714 = vsel %vm1697, %v1692, 0
    %v1717 = vsel %vm1697, %v1693, 0
    %v1720 = vsel %vm1697, %v1694, 0
    %v1723 = vsel %vm1697, %v1695, 0
    %v1726 = vsel %vm1697, %v1696, 0
    %v1729 = vsel %vm397, %v1686, 0
    %1731 = vmatpush.msra.mxu0 0.0
    %1732 = vmatpush.msra.mxu0 0.0
    %1733 = vmatpush.msra.mxu0 0.0
    %1734 = vmatpush.msra.mxu0 0.0
    %1735 = vmatpush.msra.mxu0 0.0
    %1736 = vmatpush.msra.mxu0 0.0
    %1737 = vmatpush.msra.mxu0 %v1729
    %1738 = vmatpush.msra.mxu0 %v1685
    %1739 = vmatpush.msra.mxu0 %v1684
    %1740 = vmatpush.msra.mxu0 %v1683
    %1741 = vmatpush.msra.mxu0 %v1682
    %1742 = vmatpush.msra.mxu0 %v1681
    %1743 = vmatpush.msra.mxu0 %v1680
    %1744 = vmatpush.msra.mxu0 %v1679
    %1745 = vmatpush.msra.mxu0 %v1678
    %1746 = vmatpush.msra.mxu0 %v1677
    %1747 = vmatmul.f32.gmra.mxu0 %v1699
    %v1748 = vpop.f32.mrf.mxu0
    %v1749 = vadd.f32 0.0, %v1748
    %1750 = vmatmul.f32.gmra.mxu0 %v1702
    %v1751 = vpop.f32.mrf.mxu0
    %v1752 = vadd.f32 0.0, %v1751
    %1753 = vmatmul.f32.gmra.mxu0 %v1705
    %v1754 = vpop.f32.mrf.mxu0
    %v1755 = vadd.f32 0.0, %v1754
    %1756 = vmatmul.f32.gmra.mxu0 %v1708
    %v1757 = vpop.f32.mrf.mxu0
    %v1758 = vadd.f32 0.0, %v1757
    %1759 = vmatmul.f32.gmra.mxu0 %v1711
    %v1760 = vpop.f32.mrf.mxu0
    %v1761 = vadd.f32 0.0, %v1760
    %1762 = vmatmul.f32.gmra.mxu0 %v1714
    %v1763 = vpop.f32.mrf.mxu0
    %v1764 = vadd.f32 0.0, %v1763
    %1765 = vmatmul.f32.gmra.mxu0 %v1717
    %v1766 = vpop.f32.mrf.mxu0
    %v1767 = vadd.f32 0.0, %v1766
    %1768 = vmatmul.f32.gmra.mxu0 %v1720
    %v1769 = vpop.f32.mrf.mxu0
    %v1770 = vadd.f32 0.0, %v1769
    %1771 = vmatmul.f32.gmra.mxu0 %v1723
    %v1772 = vpop.f32.mrf.mxu0
    %v1773 = vadd.f32 0.0, %v1772
    %1774 = vmatmul.f32.gmra.mxu0 %v1726
    %v1775 = vpop.f32.mrf.mxu0
    %v1776 = vadd.f32 0.0, %v1775
    %1777 = vdwg.mxu0
    %v1778 = vld [vmem:[#allocation7] sm:$0xff]
    %v1779 = vld [vmem:[#allocation7 + $0x8] sm:$0xff]
    %v1780 = vld [vmem:[#allocation7 + $0x10] sm:$0xff]
    %v1781 = vld [vmem:[#allocation7 + $0x18] sm:$0xff]
    %s1782 = scalar_lea.vmem [#allocation7], 32
    %v1783 = vld [vmem:[%s1782] sm:$0xff]
    %v1784 = vld [vmem:[%s1782 + $0x8] sm:$0xff]
    %v1785 = vld [vmem:[%s1782 + $0x10] sm:$0xff]
    %v1786 = vld [vmem:[%s1782 + $0x18] sm:$0xff]
    %v1797 = vrot.slane %v1749, 1
    %v1798 = vrot.slane %v1752, 1
    %v1799 = vsel %vm137, %v1797, %v1798
    %v1800 = vrot.slane %v1755, 1
    %v1801 = vsel %vm137, %v1798, %v1800
    %v1802 = vrot.slane %v1758, 1
    %v1803 = vsel %vm137, %v1800, %v1802
    %v1804 = vrot.slane %v1761, 1
    %v1805 = vsel %vm137, %v1802, %v1804
    %v1806 = vrot.slane %v1764, 1
    %v1807 = vsel %vm137, %v1804, %v1806
    %v1808 = vrot.slane %v1767, 1
    %v1809 = vsel %vm137, %v1806, %v1808
    %v1810 = vrot.slane %v1770, 1
    %v1811 = vsel %vm137, %v1808, %v1810
    %v1812 = vrot.slane %v1773, 1
    %v1813 = vsel %vm137, %v1810, %v1812
    %v1814 = vrot.slane %v1776, 1
    %v1815 = vsel %vm137, %v1812, %v1814
    %v1816 = vsel %vm899, %v1799, 0
    %v1818 = vsel %vm899, %v1801, 0
    %v1820 = vsel %vm899, %v1803, 0
    %v1822 = vsel %vm899, %v1805, 0
    %v1824 = vsel %vm899, %v1807, 0
    %v1826 = vsel %vm899, %v1809, 0
    %v1828 = vsel %vm899, %v1811, 0
    %v1830 = vsel %vm899, %v1813, 0
    %v1832 = vsel %vm899, %v1815, 0
    %v1834 = vsel %vm899, %v1814, 0
    %1836 = vmatpush.msra.mxu0 0.0
    %1837 = vmatpush.msra.mxu0 0.0
    %1838 = vmatpush.msra.mxu0 0.0
    %1839 = vmatpush.msra.mxu0 0.0
    %1840 = vmatpush.msra.mxu0 0.0
    %1841 = vmatpush.msra.mxu0 0.0
    %1842 = vmatpush.msra.mxu0 0.0
    %1843 = vmatpush.msra.mxu0 0.0
    %1844 = vmatpush.msra.mxu0 0.0
    %1845 = vmatpush.msra.mxu0 0.0
    %1846 = vmatpush.msra.mxu0 0.0
    %1847 = vmatpush.msra.mxu0 0.0
    %1848 = vmatpush.msra.mxu0 %v1786
    %1849 = vmatpush.msra.mxu0 %v1785
    %1850 = vmatpush.msra.mxu0 %v1784
    %1851 = vmatpush.msra.mxu0 %v1783
    %1852 = vmatmul.f32.gmra.mxu0 %v1816
    %v1853 = vpop.f32.mrf.mxu0
    %v1854 = vadd.f32 0.0, %v1853
    %1855 = vmatmul.f32.gmra.mxu0 %v1818
    %v1856 = vpop.f32.mrf.mxu0
    %v1857 = vadd.f32 0.0, %v1856
    %1858 = vmatmul.f32.gmra.mxu0 %v1820
    %v1859 = vpop.f32.mrf.mxu0
    %v1860 = vadd.f32 0.0, %v1859
    %1861 = vmatmul.f32.gmra.mxu0 %v1822
    %v1862 = vpop.f32.mrf.mxu0
    %v1863 = vadd.f32 0.0, %v1862
    %1864 = vmatmul.f32.gmra.mxu0 %v1824
    %v1865 = vpop.f32.mrf.mxu0
    %v1866 = vadd.f32 0.0, %v1865
    %1867 = vmatmul.f32.gmra.mxu0 %v1826
    %v1868 = vpop.f32.mrf.mxu0
    %v1869 = vadd.f32 0.0, %v1868
    %1870 = vmatmul.f32.gmra.mxu0 %v1828
    %v1871 = vpop.f32.mrf.mxu0
    %v1872 = vadd.f32 0.0, %v1871
    %1873 = vmatmul.f32.gmra.mxu0 %v1830
    %v1874 = vpop.f32.mrf.mxu0
    %v1875 = vadd.f32 0.0, %v1874
    %1876 = vmatmul.f32.gmra.mxu0 %v1832
    %v1877 = vpop.f32.mrf.mxu0
    %v1878 = vadd.f32 0.0, %v1877
    %1879 = vmatmul.f32.gmra.mxu0 %v1834
    %v1880 = vpop.f32.mrf.mxu0
    %v1881 = vadd.f32 0.0, %v1880
    %1882 = vdwg.mxu0
    %v1883 = vsel %vm899, %v1749, 0
    %v1885 = vsel %vm899, %v1752, 0
    %v1887 = vsel %vm899, %v1755, 0
    %v1889 = vsel %vm899, %v1758, 0
    %v1891 = vsel %vm899, %v1761, 0
    %v1893 = vsel %vm899, %v1764, 0
    %v1895 = vsel %vm899, %v1767, 0
    %v1897 = vsel %vm899, %v1770, 0
    %v1899 = vsel %vm899, %v1773, 0
    %v1901 = vsel %vm899, %v1776, 0
    %1903 = vmatpush.msra.mxu0 0.0
    %1904 = vmatpush.msra.mxu0 0.0
    %1905 = vmatpush.msra.mxu0 0.0
    %1906 = vmatpush.msra.mxu0 0.0
    %1907 = vmatpush.msra.mxu0 0.0
    %1908 = vmatpush.msra.mxu0 0.0
    %1909 = vmatpush.msra.mxu0 0.0
    %1910 = vmatpush.msra.mxu0 0.0
    %1911 = vmatpush.msra.mxu0 0.0
    %1912 = vmatpush.msra.mxu0 0.0
    %1913 = vmatpush.msra.mxu0 0.0
    %1914 = vmatpush.msra.mxu0 0.0
    %1915 = vmatpush.msra.mxu0 %v1781
    %1916 = vmatpush.msra.mxu0 %v1780
    %1917 = vmatpush.msra.mxu0 %v1779
    %1918 = vmatpush.msra.mxu0 %v1778
    %1919 = vmatmul.f32.gmra.mxu0 %v1883
    %v1920 = vpop.f32.mrf.mxu0
    %v1921 = vadd.f32 %v1854, %v1920
    %1922 = vmatmul.f32.gmra.mxu0 %v1885
    %v1923 = vpop.f32.mrf.mxu0
    %v1924 = vadd.f32 %v1857, %v1923
    %1925 = vmatmul.f32.gmra.mxu0 %v1887
    %v1926 = vpop.f32.mrf.mxu0
    %v1927 = vadd.f32 %v1860, %v1926
    %1928 = vmatmul.f32.gmra.mxu0 %v1889
    %v1929 = vpop.f32.mrf.mxu0
    %v1930 = vadd.f32 %v1863, %v1929
    %1931 = vmatmul.f32.gmra.mxu0 %v1891
    %v1932 = vpop.f32.mrf.mxu0
    %v1933 = vadd.f32 %v1866, %v1932
    %1934 = vmatmul.f32.gmra.mxu0 %v1893
    %v1935 = vpop.f32.mrf.mxu0
    %v1936 = vadd.f32 %v1869, %v1935
    %1937 = vmatmul.f32.gmra.mxu0 %v1895
    %v1938 = vpop.f32.mrf.mxu0
    %v1939 = vadd.f32 %v1872, %v1938
    %1940 = vmatmul.f32.gmra.mxu0 %v1897
    %v1941 = vpop.f32.mrf.mxu0
    %v1942 = vadd.f32 %v1875, %v1941
    %1943 = vmatmul.f32.gmra.mxu0 %v1899
    %v1944 = vpop.f32.mrf.mxu0
    %v1945 = vadd.f32 %v1878, %v1944
    %1946 = vmatmul.f32.gmra.mxu0 %v1901
    %v1947 = vpop.f32.mrf.mxu0
    %v1948 = vadd.f32 %v1881, %v1947
    %1949 = vdwg.mxu0
    %v1950 = vld [vmem:[%s8] sm:$0x1]
    %v1952 = vperm.slane %v1950, 0
    %v1954 = vadd.f32 %v1921, %v1952
    %v1955 = vadd.f32 %v1924, %v1952
    %v1956 = vadd.f32 %v1927, %v1952
    %v1957 = vadd.f32 %v1930, %v1952
    %v1958 = vadd.f32 %v1933, %v1952
    %v1959 = vadd.f32 %v1936, %v1952
    %v1960 = vadd.f32 %v1939, %v1952
    %v1961 = vadd.f32 %v1942, %v1952
    %v1962 = vadd.f32 %v1945, %v1952
    %v1963 = vadd.f32 %v1948, %v1952
    %v1964 = vmax.f32 %v1954, 0.0
    %v1965 = vmax.f32 %v1955, 0.0
    %v1966 = vmax.f32 %v1956, 0.0
    %v1967 = vmax.f32 %v1957, 0.0
    %v1968 = vmax.f32 %v1958, 0.0
    %v1969 = vmax.f32 %v1959, 0.0
    %v1970 = vmax.f32 %v1960, 0.0
    %v1971 = vmax.f32 %v1961, 0.0
    %v1972 = vmax.f32 %v1962, 0.0
    %v1973 = vmax.f32 %v1963, 0.0
    %v1984 = vrot.slane %v1964, 1
    %v1985 = vrot.slane %v1965, 1
    %v1986 = vsel %vm137, %v1984, %v1985
    %v1987 = vrot.slane %v1966, 1
    %v1988 = vsel %vm137, %v1985, %v1987
    %v1989 = vrot.slane %v1967, 1
    %v1990 = vsel %vm137, %v1987, %v1989
    %v1991 = vrot.slane %v1968, 1
    %v1992 = vsel %vm137, %v1989, %v1991
    %v1993 = vrot.slane %v1969, 1
    %v1994 = vsel %vm137, %v1991, %v1993
    %v1995 = vrot.slane %v1970, 1
    %v1996 = vsel %vm137, %v1993, %v1995
    %v1997 = vrot.slane %v1971, 1
    %v1998 = vsel %vm137, %v1995, %v1997
    %v1999 = vrot.slane %v1972, 1
    %v2000 = vsel %vm137, %v1997, %v1999
    %v2001 = vrot.slane %v1973, 1
    %v2002 = vsel %vm137, %v1999, %v2001
    %v2013 = vmax.f32 %v1964, %v1986
    %v2014 = vmax.f32 %v1965, %v1988
    %v2015 = vmax.f32 %v1966, %v1990
    %v2016 = vmax.f32 %v1967, %v1992
    %v2017 = vmax.f32 %v1968, %v1994
    %v2018 = vmax.f32 %v1969, %v1996
    %v2019 = vmax.f32 %v1970, %v1998
    %v2020 = vmax.f32 %v1971, %v2000
    %v2021 = vmax.f32 %v1972, %v2002
    %v2022 = vmax.f32 %v1973, %v2001
    %v2023 = vld [vmem:[%s12] sm:$0xff]
    %v2025 = vsel %vm1697, %v2023, 0
    %v2028 = vsel %vm397, %v2022, 0
    %2030 = vmatpush.msra.mxu0 0.0
    %2031 = vmatpush.msra.mxu0 0.0
    %2032 = vmatpush.msra.mxu0 0.0
    %2033 = vmatpush.msra.mxu0 0.0
    %2034 = vmatpush.msra.mxu0 0.0
    %2035 = vmatpush.msra.mxu0 0.0
    %2036 = vmatpush.msra.mxu0 %v2028
    %2037 = vmatpush.msra.mxu0 %v2021
    %2038 = vmatpush.msra.mxu0 %v2020
    %2039 = vmatpush.msra.mxu0 %v2019
    %2040 = vmatpush.msra.mxu0 %v2018
    %2041 = vmatpush.msra.mxu0 %v2017
    %2042 = vmatpush.msra.mxu0 %v2016
    %2043 = vmatpush.msra.mxu0 %v2015
    %2044 = vmatpush.msra.mxu0 %v2014
    %2045 = vmatpush.msra.mxu0 %v2013
    %2046 = vmatmul.f32.gmra.mxu0 %v2025
    %v2047 = vpop.f32.mrf.mxu0
    %v2048 = vadd.f32 0.0, %v2047
    %2049 = vdwg.mxu0
    %v2050 = vld [vmem:[%s13] sm:$0xff]
    %v2051 = vld [vmem:[%s13 + $0x8] sm:$0xff]
    %v2052 = vld [vmem:[%s13 + $0x10] sm:$0xff]
    %v2053 = vld [vmem:[%s13 + $0x18] sm:$0xff]
    %s2054 = scalar_lea.vmem %s12, 8
    %v2055 = vld [vmem:[%s2054] sm:$0xff]
    %v2057 = vsel %vm1697, %v2055, 0
    %2059 = vmatpush.msra.mxu0 0.0
    %2060 = vmatpush.msra.mxu0 0.0
    %2061 = vmatpush.msra.mxu0 0.0
    %2062 = vmatpush.msra.mxu0 0.0
    %2063 = vmatpush.msra.mxu0 0.0
    %2064 = vmatpush.msra.mxu0 0.0
    %2065 = vmatpush.msra.mxu0 %v2028
    %2066 = vmatpush.msra.mxu0 %v2021
    %2067 = vmatpush.msra.mxu0 %v2020
    %2068 = vmatpush.msra.mxu0 %v2019
    %2069 = vmatpush.msra.mxu0 %v2018
    %2070 = vmatpush.msra.mxu0 %v2017
    %2071 = vmatpush.msra.mxu0 %v2016
    %2072 = vmatpush.msra.mxu0 %v2015
    %2073 = vmatpush.msra.mxu0 %v2014
    %2074 = vmatpush.msra.mxu0 %v2013
    %2075 = vmatmul.f32.gmra.mxu0 %v2057
    %v2076 = vpop.f32.mrf.mxu0
    %v2077 = vadd.f32 0.0, %v2076
    %2078 = vdwg.mxu0
    %s2079 = scalar_lea.vmem %s13, 32
    %v2080 = vld [vmem:[%s2079] sm:$0xff]
    %v2081 = vld [vmem:[%s2079 + $0x8] sm:$0xff]
    %v2082 = vld [vmem:[%s2079 + $0x10] sm:$0xff]
    %v2083 = vld [vmem:[%s2079 + $0x18] sm:$0xff]
    %v2085 = vsel %vm899, %v2077, 0
    %2087 = vmatpush.msra.mxu0 0.0
    %2088 = vmatpush.msra.mxu0 0.0
    %2089 = vmatpush.msra.mxu0 0.0
    %2090 = vmatpush.msra.mxu0 0.0
    %2091 = vmatpush.msra.mxu0 0.0
    %2092 = vmatpush.msra.mxu0 0.0
    %2093 = vmatpush.msra.mxu0 0.0
    %2094 = vmatpush.msra.mxu0 0.0
    %2095 = vmatpush.msra.mxu0 0.0
    %2096 = vmatpush.msra.mxu0 0.0
    %2097 = vmatpush.msra.mxu0 0.0
    %2098 = vmatpush.msra.mxu0 0.0
    %2099 = vmatpush.msra.mxu0 %v2083
    %2100 = vmatpush.msra.mxu0 %v2082
    %2101 = vmatpush.msra.mxu0 %v2081
    %2102 = vmatpush.msra.mxu0 %v2080
    %2103 = vmatmul.f32.gmra.mxu0 %v2085
    %v2104 = vpop.f32.mrf.mxu0
    %v2105 = vadd.f32 0.0, %v2104
    %2106 = vdwg.mxu0
    %v2108 = vsel %vm899, %v2048, 0
    %2110 = vmatpush.msra.mxu0 0.0
    %2111 = vmatpush.msra.mxu0 0.0
    %2112 = vmatpush.msra.mxu0 0.0
    %2113 = vmatpush.msra.mxu0 0.0
    %2114 = vmatpush.msra.mxu0 0.0
    %2115 = vmatpush.msra.mxu0 0.0
    %2116 = vmatpush.msra.mxu0 0.0
    %2117 = vmatpush.msra.mxu0 0.0
    %2118 = vmatpush.msra.mxu0 0.0
    %2119 = vmatpush.msra.mxu0 0.0
    %2120 = vmatpush.msra.mxu0 0.0
    %2121 = vmatpush.msra.mxu0 0.0
    %2122 = vmatpush.msra.mxu0 %v2053
    %2123 = vmatpush.msra.mxu0 %v2052
    %2124 = vmatpush.msra.mxu0 %v2051
    %2125 = vmatpush.msra.mxu0 %v2050
    %2126 = vmatmul.f32.gmra.mxu0 %v2108
    %v2127 = vpop.f32.mrf.mxu0
    %v2128 = vadd.f32 %v2105, %v2127
    %2129 = vdwg.mxu0
    %s2130 = scalar_lea.vmem %s12, 16
    %v2131 = vld [vmem:[%s2130] sm:$0xff]
    %v2133 = vsel %vm1697, %v2131, 0
    %2135 = vmatpush.msra.mxu0 0.0
    %2136 = vmatpush.msra.mxu0 0.0
    %2137 = vmatpush.msra.mxu0 0.0
    %2138 = vmatpush.msra.mxu0 0.0
    %2139 = vmatpush.msra.mxu0 0.0
    %2140 = vmatpush.msra.mxu0 0.0
    %2141 = vmatpush.msra.mxu0 %v2028
    %2142 = vmatpush.msra.mxu0 %v2021
    %2143 = vmatpush.msra.mxu0 %v2020
    %2144 = vmatpush.msra.mxu0 %v2019
    %2145 = vmatpush.msra.mxu0 %v2018
    %2146 = vmatpush.msra.mxu0 %v2017
    %2147 = vmatpush.msra.mxu0 %v2016
    %2148 = vmatpush.msra.mxu0 %v2015
    %2149 = vmatpush.msra.mxu0 %v2014
    %2150 = vmatpush.msra.mxu0 %v2013
    %2151 = vmatmul.f32.gmra.mxu0 %v2133
    %v2152 = vpop.f32.mrf.mxu0
    %v2153 = vadd.f32 0.0, %v2152
    %2154 = vdwg.mxu0
    %s2155 = scalar_lea.vmem %s13, 64
    %v2156 = vld [vmem:[%s2155] sm:$0xff]
    %v2157 = vld [vmem:[%s2155 + $0x8] sm:$0xff]
    %v2158 = vld [vmem:[%s2155 + $0x10] sm:$0xff]
    %v2159 = vld [vmem:[%s2155 + $0x18] sm:$0xff]
    %v2161 = vsel %vm899, %v2153, 0
    %2163 = vmatpush.msra.mxu0 0.0
    %2164 = vmatpush.msra.mxu0 0.0
    %2165 = vmatpush.msra.mxu0 0.0
    %2166 = vmatpush.msra.mxu0 0.0
    %2167 = vmatpush.msra.mxu0 0.0
    %2168 = vmatpush.msra.mxu0 0.0
    %2169 = vmatpush.msra.mxu0 0.0
    %2170 = vmatpush.msra.mxu0 0.0
    %2171 = vmatpush.msra.mxu0 0.0
    %2172 = vmatpush.msra.mxu0 0.0
    %2173 = vmatpush.msra.mxu0 0.0
    %2174 = vmatpush.msra.mxu0 0.0
    %2175 = vmatpush.msra.mxu0 %v2159
    %2176 = vmatpush.msra.mxu0 %v2158
    %2177 = vmatpush.msra.mxu0 %v2157
    %2178 = vmatpush.msra.mxu0 %v2156
    %2179 = vmatmul.f32.gmra.mxu0 %v2161
    %v2180 = vpop.f32.mrf.mxu0
    %v2181 = vadd.f32 0.0, %v2180
    %2182 = vdwg.mxu0
    %v2183 = vadd.f32 %v2128, %v2181
    %s2184 = scalar_lea.vmem %s12, 24
    %v2185 = vld [vmem:[%s2184] sm:$0xff]
    %v2187 = vsel %vm1697, %v2185, 0
    %2189 = vmatpush.msra.mxu0 0.0
    %2190 = vmatpush.msra.mxu0 0.0
    %2191 = vmatpush.msra.mxu0 0.0
    %2192 = vmatpush.msra.mxu0 0.0
    %2193 = vmatpush.msra.mxu0 0.0
    %2194 = vmatpush.msra.mxu0 0.0
    %2195 = vmatpush.msra.mxu0 %v2028
    %2196 = vmatpush.msra.mxu0 %v2021
    %2197 = vmatpush.msra.mxu0 %v2020
    %2198 = vmatpush.msra.mxu0 %v2019
    %2199 = vmatpush.msra.mxu0 %v2018
    %2200 = vmatpush.msra.mxu0 %v2017
    %2201 = vmatpush.msra.mxu0 %v2016
    %2202 = vmatpush.msra.mxu0 %v2015
    %2203 = vmatpush.msra.mxu0 %v2014
    %2204 = vmatpush.msra.mxu0 %v2013
    %2205 = vmatmul.f32.gmra.mxu0 %v2187
    %v2206 = vpop.f32.mrf.mxu0
    %v2207 = vadd.f32 0.0, %v2206
    %2208 = vdwg.mxu0
    %s2209 = scalar_lea.vmem %s13, 96
    %v2210 = vld [vmem:[%s2209] sm:$0xff]
    %v2211 = vld [vmem:[%s2209 + $0x8] sm:$0xff]
    %v2212 = vld [vmem:[%s2209 + $0x10] sm:$0xff]
    %v2213 = vld [vmem:[%s2209 + $0x18] sm:$0xff]
    %v2215 = vsel %vm899, %v2207, 0
    %2217 = vmatpush.msra.mxu0 0.0
    %2218 = vmatpush.msra.mxu0 0.0
    %2219 = vmatpush.msra.mxu0 0.0
    %2220 = vmatpush.msra.mxu0 0.0
    %2221 = vmatpush.msra.mxu0 0.0
    %2222 = vmatpush.msra.mxu0 0.0
    %2223 = vmatpush.msra.mxu0 0.0
    %2224 = vmatpush.msra.mxu0 0.0
    %2225 = vmatpush.msra.mxu0 0.0
    %2226 = vmatpush.msra.mxu0 0.0
    %2227 = vmatpush.msra.mxu0 0.0
    %2228 = vmatpush.msra.mxu0 0.0
    %2229 = vmatpush.msra.mxu0 %v2213
    %2230 = vmatpush.msra.mxu0 %v2212
    %2231 = vmatpush.msra.mxu0 %v2211
    %2232 = vmatpush.msra.mxu0 %v2210
    %2233 = vmatmul.f32.gmra.mxu0 %v2215
    %v2234 = vpop.f32.mrf.mxu0
    %v2235 = vadd.f32 0.0, %v2234
    %2236 = vdwg.mxu0
    %v2237 = vadd.f32 %v2183, %v2235
    %v2238 = vld [vmem:[%s14] sm:$0x1]
    %v2240 = vperm.slane %v2238, 0
    %v2242 = vadd.f32 %v2237, %v2240
    %vm2243 = vcmask 130048
    %2244 = vst.msk [vmem:[#allocation8] sm:$0xff] %vm2243, %v2242
    // Predicated region
    $region74: #{tpu_custom_call.1} parent=1 // pred_check
      _
    $region75: #{tpu_custom_call.1} parent=1 // pred_check_branch
      %2246 = sbr.rel (0) target = $region77
    $region76: #{tpu_custom_call.1} parent=1 // pred_region
      %2248 = vsyncadd [#allocation4], 0
      %s2250 = sshll.u32 [#allocation8], 4
      %s2251 = int_to_ptr.vmem [resolvable:$true] %s2250
      %s2252 = sshll.u32 %s15, 4
      %s2253 = int_to_ptr.hbm [resolvable:$true] %s2252
      %2255 = dma.vmem_to_hbm [thread:$0]  %s2251, 128, %s2253, [#allocation4]
    $region77: #{tpu_custom_call.1} parent=1 // pred_fallthru
      _
    // Predicated region
    $region78: #{tpu_custom_call.1} parent=1 // pred_check
      _
    $region79: #{tpu_custom_call.1} parent=1 // pred_check_branch
      %2257 = sbr.rel (0) target = $region81
    $region80: #{tpu_custom_call.1} parent=1 // pred_region
      %2259 = dma.done [#allocation4], 128
    $region81: #{tpu_custom_call.1} parent=1 // pred_fallthru
      _
    %2260 = vsyncpa [#allocation3], 1
    %2261 = vsyncpa [#allocation6], 1
    %2262 = vsyncpa [#allocation4], 1

</llo_original>
